<compile_context>
chip_gen: v7x
topology: tpu7x:2x2x1
jax: 0.10.0
libtpu: 0.0.40
codegen_flags: <defaults>
</compile_context>

<pallas_src>
import functools

import jax
import jax.numpy as jnp
from jax.experimental import pallas as pl
from jax.experimental.pallas import tpu as pltpu

N_EMBD = 80
N_HEAD = 10
HEAD_SIZE = N_EMBD // N_HEAD      # 8
HIDDEN = 4 * N_EMBD               # 320
LN_EPS = 1e-5

# Lane-dense padded sizes (multiples of the 128-lane vreg width).  Padded channels are
# zero-filled everywhere, so they never change the math.
C_PAD = 128
HIDDEN_PAD = 384


def block_kernel(x_ref, wqkv_ref, wproj_ref, w1_ref, w2_ref, vecs_ref, b1_ref,
                 hsel_ref, o_ref, *, seq_len, b_tile):
    f32, bf16 = jnp.float32, jnp.bfloat16
    R = b_tile * seq_len           # flattened rows handled by this grid step
    CP = C_PAD
    H = N_HEAD
    HT = H * seq_len               # expanded key width per sequence

    x = x_ref[...].astype(f32)                           # (R, CP); padded lanes are 0

    vecs = vecs_ref[...]                                  # (8, CP) f32 stacked vectors
    ln1g, ln1b = vecs[0:1, :], vecs[1:2, :]
    bproj = vecs[2:3, :]
    ln2g, ln2b = vecs[3:4, :], vecs[4:5, :]
    b2 = vecs[5:6, :]
    lane_mask = vecs[6:7, :]                               # 1.0 on the 80 real channels

    inv_c = 1.0 / N_EMBD

    def layernorm(h, g, b):
        # h has zeros in padded lanes; statistics are over the 80 real channels.
        mu = jnp.sum(h, axis=-1, keepdims=True) * inv_c
        c = (h - mu) * lane_mask
        var = jnp.sum(c * c, axis=-1, keepdims=True) * inv_c
        return c * jax.lax.rsqrt(var + LN_EPS) * g + b     # g,b zero on padded lanes

    # ---- LayerNorm 1 + fused QKV projection (one bf16 MXU matmul) ----
    h1 = layernorm(x, ln1g, ln1b).astype(bf16)
    qkv = jnp.dot(h1, wqkv_ref[...], preferred_element_type=f32)      # (R, 3*CP)
    # 128-lane-aligned slices; attention scale is already folded into Wq.
    q3 = qkv[:, 0 * CP:1 * CP].reshape(b_tile, seq_len, CP).astype(bf16)
    k3 = qkv[:, 1 * CP:2 * CP].reshape(b_tile, seq_len, CP)           # keep f32 for
    v3 = qkv[:, 2 * CP:3 * CP].reshape(b_tile, seq_len, CP)           # aligned concat

    # ---- per-sequence attention via head expansion (width H*T, not H*R) ----
    # hsel[j, c] = 1 iff channel c belongs to head (j // T); expanded row j encodes
    # (head = j // T, key index = j % T).  Grid-invariant, precomputed in the wrapper.
    hsel_f = hsel_ref[...]                                 # (HT, CP) f32 {0,1}
    hsel_b = hsel_f.astype(bf16)
    k_exp = (jnp.concatenate([k3] * H, axis=1) * hsel_f[None]).astype(bf16)  # (b,HT,CP)
    v_exp = (jnp.concatenate([v3] * H, axis=1) * hsel_f[None]).astype(bf16)  # (b,HT,CP)

    s = jnp.einsum('btd,bjd->btj', q3, k_exp,
                   preferred_element_type=f32)             # (b, T, HT)
    # Per-row shift is constant across every head's key group, so the per-(row, head)
    # softmax below stays exact.
    s = s - jnp.max(s, axis=-1, keepdims=True)
    p = jnp.exp(s)
    p16 = p.astype(bf16)

    # Per-(row, head) softmax denominator broadcast onto that head's output lanes.
    denom = jnp.dot(p16.reshape(R, HT), hsel_b,
                    preferred_element_type=f32)            # (R, CP)
    denom = denom + (1.0 - lane_mask) + 1e-20              # padded-lane / underflow guard

    attn_un = jnp.einsum('btj,bjd->btd', p16, v_exp,
                         preferred_element_type=f32)       # (b, T, CP)
    attn = attn_un.reshape(R, CP) * pl.reciprocal(denom, approx=True)

    sa = jnp.dot(attn.astype(bf16), wproj_ref[...],
                 preferred_element_type=f32) + bproj
    x = x + sa                                             # residual 1

    # ---- LayerNorm 2 + feed-forward ----
    h2 = layernorm(x, ln2g, ln2b).astype(bf16)
    ff = jnp.dot(h2, w1_ref[...], preferred_element_type=f32) + b1_ref[...]
    ff = jnp.maximum(ff, 0.0).astype(bf16)                 # ReLU
    ff = jnp.dot(ff, w2_ref[...], preferred_element_type=f32) + b2
    x = x + ff                                             # residual 2

    o_ref[...] = x.astype(o_ref.dtype)


def prepare_block_params(params):
    """One-time preparation: pad to lane-dense shapes, fuse QKV, fold the attention
    scale into Wq, cast weights to bf16, and stack the small per-channel vectors."""
    (ln1g, ln1b, wq, wk, wv, wproj, bproj, ln2g, ln2b, w1, b1, w2, b2) = params
    f32, bf16 = jnp.float32, jnp.bfloat16

    def pad2(w, rows, cols, dtype):
        w = w.astype(f32)
        w = jnp.pad(w, ((0, rows - w.shape[0]), (0, cols - w.shape[1])))
        return w.astype(dtype)

    def padv(v, cols):
        v = v.reshape(1, -1).astype(f32)
        return jnp.pad(v, ((0, 0), (0, cols - v.shape[1])))

    scale = N_EMBD ** (-0.5)        # matches the torch code's C**-0.5 with C = n_embd
    wqkv = jnp.concatenate([pad2(wq * scale, C_PAD, C_PAD, bf16),
                            pad2(wk, C_PAD, C_PAD, bf16),
                            pad2(wv, C_PAD, C_PAD, bf16)], axis=1)   # (C_PAD, 3*C_PAD)
    wproj_p = pad2(wproj, C_PAD, C_PAD, bf16)
    w1_p = pad2(w1, C_PAD, HIDDEN_PAD, bf16)
    w2_p = pad2(w2, HIDDEN_PAD, C_PAD, bf16)
    lane_mask = (jnp.arange(C_PAD) < N_EMBD).astype(f32).reshape(1, C_PAD)
    vecs = jnp.concatenate([padv(ln1g, C_PAD), padv(ln1b, C_PAD), padv(bproj, C_PAD),
                            padv(ln2g, C_PAD), padv(ln2b, C_PAD), padv(b2, C_PAD),
                            lane_mask, jnp.zeros((1, C_PAD), f32)], axis=0)  # (8, C_PAD)
    b1_p = padv(b1, HIDDEN_PAD)                                              # (1, H_PAD)
    return (wqkv, wproj_p, w1_p, w2_p, vecs, b1_p)


def _pick_b_tile(B, T, rows_per_step):
    """Largest batch-tile whose flattened row count is sublane-aligned, <= rows_per_step
    and (when possible) leaves >= 2 grid steps so both v7x TensorCores get work."""
    target = max(1, rows_per_step // T)
    valid = [d for d in range(1, B + 1)
             if B % d == 0 and ((d * T) % 8 == 0 or d == B)]
    small = [d for d in valid if d <= target] or valid
    multi = [d for d in small if B // d >= 2] or small
    return max(multi)


def transformer_block(x, prepared_params, *, rows_per_step=64):
    B, T, C = x.shape
    assert C == N_EMBD
    wqkv, wproj, w1, w2, vecs, b1 = prepared_params

    b_tile = _pick_b_tile(B, T, rows_per_step)
    rows = b_tile * T
    grid = (B * T // rows,)

    # Grid-invariant head-selection mask (H*T, C_PAD): row j -> head j // T, columns of
    # that head's 8 channels are 1.  Fetched once (constant index_map), reused by every
    # grid step for the K/V expansion and the softmax denominator.
    HT = N_HEAD * T
    j = jnp.arange(HT).reshape(HT, 1)
    c = jnp.arange(C_PAD).reshape(1, C_PAD)
    head_sel = (((j // T) == (c // HEAD_SIZE)) & (c < N_EMBD)).astype(jnp.float32)

    # Lane-dense layout: flatten (B, T) into rows and zero-pad channels 80 -> 128 so the
    # kernel only touches full (8, 128) tiles and the output store is unmasked.
    x_flat = jnp.pad(x.reshape(B * T, C), ((0, 0), (0, C_PAD - C)))

    kernel = functools.partial(block_kernel, seq_len=T, b_tile=b_tile)
    const = lambda shape: pl.BlockSpec(shape, lambda i: (0, 0))

    grid_spec = pltpu.PrefetchScalarGridSpec(
        num_scalar_prefetch=0,
        grid=grid,
        in_specs=[pl.BlockSpec((rows, C_PAD), lambda i: (i, 0)),   # activations
                  const((C_PAD, 3 * C_PAD)),                       # fused QKV weight
                  const((C_PAD, C_PAD)),                           # attention out-proj
                  const((C_PAD, HIDDEN_PAD)),                      # FFN W1
                  const((HIDDEN_PAD, C_PAD)),                      # FFN W2
                  const((8, C_PAD)),                               # stacked LN/bias vecs
                  const((1, HIDDEN_PAD)),                          # FFN b1
                  const((HT, C_PAD))],                             # head-selection mask
        out_specs=pl.BlockSpec((rows, C_PAD), lambda i: (i, 0)),
    )

    out = pl.pallas_call(
        kernel,
        out_shape=jax.ShapeDtypeStruct((B * T, C_PAD), x.dtype),
        grid_spec=grid_spec,
        compiler_params=pltpu.CompilerParams(dimension_semantics=("parallel",)),
    )(x_flat, wqkv, wproj, w1, w2, vecs, b1, head_sel)

    return out[:, :C].reshape(B, T, C)


# ----------------------------- reference & test harness -----------------------------

def _layernorm_ref(h, gamma, beta):
    mu = jnp.mean(h, axis=-1, keepdims=True)
    var = jnp.mean((h - mu) ** 2, axis=-1, keepdims=True)
    return (h - mu) * jax.lax.rsqrt(var + LN_EPS) * gamma + beta


def make_params(key):
    ks = jax.random.split(key, 13)
    init = lambda k, shape, s: (s * jax.random.normal(k, shape)).astype(jnp.float32)
    ln1g = (1.0 + 0.1 * jax.random.normal(ks[9], (1, N_EMBD))).astype(jnp.float32)
    ln1b = init(ks[10], (1, N_EMBD), 0.1)
    ln2g = (1.0 + 0.1 * jax.random.normal(ks[11], (1, N_EMBD))).astype(jnp.float32)
    ln2b = init(ks[12], (1, N_EMBD), 0.1)
    wq = init(ks[0], (N_EMBD, N_EMBD), 0.05)   # per-head weights stacked along out dim
    wk = init(ks[1], (N_EMBD, N_EMBD), 0.05)
    wv = init(ks[2], (N_EMBD, N_EMBD), 0.05)
    wproj = init(ks[3], (N_EMBD, N_EMBD), 0.05)
    bproj = init(ks[4], (1, N_EMBD), 0.05)
    w1 = init(ks[5], (N_EMBD, HIDDEN), 0.05)
    b1 = init(ks[6], (1, HIDDEN), 0.05)
    w2 = init(ks[7], (HIDDEN, N_EMBD), 0.05)
    b2 = init(ks[8], (1, N_EMBD), 0.05)
    return (ln1g, ln1b, wq, wk, wv, wproj, bproj, ln2g, ln2b, w1, b1, w2, b2)


def reference_block(x, params):
    """Pure-JAX f32 reference matching the PyTorch forward (dropout=0, adjacent=None)."""
    (ln1g, ln1b, wq, wk, wv, wproj, bproj, ln2g, ln2b, w1, b1, w2, b2) = params
    h1 = _layernorm_ref(x, ln1g, ln1b)
    q = h1 @ wq
    k = h1 @ wk
    v = h1 @ wv
    B, T, C = x.shape
    scale = C ** (-0.5)            # the torch code scales by C**-0.5 (C = n_embd)
    q = q.reshape(B, T, N_HEAD, HEAD_SIZE).transpose(0, 2, 1, 3)
    k = k.reshape(B, T, N_HEAD, HEAD_SIZE).transpose(0, 2, 1, 3)
    v = v.reshape(B, T, N_HEAD, HEAD_SIZE).transpose(0, 2, 1, 3)
    wei = jnp.einsum('bhtd,bhsd->bhts', q, k) * scale
    wei = jax.nn.softmax(wei, axis=-1)
    attn = jnp.einsum('bhts,bhsd->bhtd', wei, v).transpose(0, 2, 1, 3).reshape(B, T, C)
    x = x + (attn @ wproj + bproj)
    h2 = _layernorm_ref(x, ln2g, ln2b)
    ff = jnp.maximum(h2 @ w1 + b1, 0.0) @ w2 + b2
    return x + ff


if __name__ == "__main__":
    key = jax.random.PRNGKey(0)
    k_x, k_p = jax.random.split(key)

    B, T = 2, 8
    x = jax.random.normal(k_x, (B, T, N_EMBD), dtype=jnp.float32)
    params = make_params(k_p)
    prepared = prepare_block_params(params)

    out = jax.block_until_ready(transformer_block(x, prepared))

    ref = reference_block(x, params)
    assert out.shape == (B, T, N_EMBD)
    # tolerance accounts for bf16 MXU operands (f32 accumulation) and the approx (EUP)
    # reciprocal in the softmax normalisation
    assert jnp.allclose(out, ref, atol=3e-2, rtol=3e-2), "mismatch vs pure-JAX reference"

    print("KERNEL_OK")
</pallas_src>

<mosaic_0001>
module attributes {stable_mosaic.version = 11 : i64} {
  func.func @block_kernel(%arg0: i32, %arg1: memref<8x128xf32, #tpu.memory_space<vmem>>, %arg2: memref<128x384xbf16, #tpu.memory_space<vmem>>, %arg3: memref<128x128xbf16, #tpu.memory_space<vmem>>, %arg4: memref<128x384xbf16, #tpu.memory_space<vmem>>, %arg5: memref<384x128xbf16, #tpu.memory_space<vmem>>, %arg6: memref<8x128xf32, #tpu.memory_space<vmem>>, %arg7: memref<1x384xf32, #tpu.memory_space<vmem>>, %arg8: memref<80x128xf32, #tpu.memory_space<vmem>>, %arg9: memref<8x128xf32, #tpu.memory_space<vmem>>) attributes {dimension_semantics = [#tpu.dimension_semantics<parallel>], iteration_bounds = array<i64: 2>, scalar_prefetch = 0 : i64, scratch_operands = 0 : i64, tpu.core_type = #tpu.core_type<tc>, window_params = [{transform_indices = @transform_0, window_bounds = array<i64: 8, 128>}, {pipeline_mode = #tpu.pipeline_mode<synchronous>, transform_indices = @transform_1, window_bounds = array<i64: 128, 384>}, {pipeline_mode = #tpu.pipeline_mode<synchronous>, transform_indices = @transform_2, window_bounds = array<i64: 128, 128>}, {pipeline_mode = #tpu.pipeline_mode<synchronous>, transform_indices = @transform_3, window_bounds = array<i64: 128, 384>}, {pipeline_mode = #tpu.pipeline_mode<synchronous>, transform_indices = @transform_4, window_bounds = array<i64: 384, 128>}, {pipeline_mode = #tpu.pipeline_mode<synchronous>, transform_indices = @transform_5, window_bounds = array<i64: 8, 128>}, {pipeline_mode = #tpu.pipeline_mode<synchronous>, transform_indices = @transform_6, window_bounds = array<i64: 1, 384>}, {pipeline_mode = #tpu.pipeline_mode<synchronous>, transform_indices = @transform_7, window_bounds = array<i64: 80, 128>}, {transform_indices = @transform_8, window_bounds = array<i64: 8, 128>}]} {
    %c0 = arith.constant 0 : index
    %c0_0 = arith.constant 0 : index
    %0 = vector.load %arg1[%c0, %c0_0] : memref<8x128xf32, #tpu.memory_space<vmem>>, vector<8x128xf32>
    %c0_1 = arith.constant 0 : index
    %c0_2 = arith.constant 0 : index
    %1 = vector.load %arg6[%c0_1, %c0_2] : memref<8x128xf32, #tpu.memory_space<vmem>>, vector<8x128xf32>
    %2 = vector.extract_strided_slice %1 {offsets = [0, 0], sizes = [1, 128], strides = [1, 1]} : vector<8x128xf32> to vector<1x128xf32>
    %3 = vector.extract_strided_slice %1 {offsets = [1, 0], sizes = [1, 128], strides = [1, 1]} : vector<8x128xf32> to vector<1x128xf32>
    %4 = vector.extract_strided_slice %1 {offsets = [2, 0], sizes = [1, 128], strides = [1, 1]} : vector<8x128xf32> to vector<1x128xf32>
    %5 = vector.extract_strided_slice %1 {offsets = [3, 0], sizes = [1, 128], strides = [1, 1]} : vector<8x128xf32> to vector<1x128xf32>
    %6 = vector.extract_strided_slice %1 {offsets = [4, 0], sizes = [1, 128], strides = [1, 1]} : vector<8x128xf32> to vector<1x128xf32>
    %7 = vector.extract_strided_slice %1 {offsets = [5, 0], sizes = [1, 128], strides = [1, 1]} : vector<8x128xf32> to vector<1x128xf32>
    %8 = vector.extract_strided_slice %1 {offsets = [6, 0], sizes = [1, 128], strides = [1, 1]} : vector<8x128xf32> to vector<1x128xf32>
    %cst = arith.constant dense<0.000000e+00> : vector<8xf32>
    %9 = vector.multi_reduction <add>, %0, %cst [1] : vector<8x128xf32> to vector<8xf32>
    %10 = vector.shape_cast %9 : vector<8xf32> to vector<8x1xf32>
    %cst_3 = arith.constant 1.250000e-02 : f32
    %11 = vector.broadcast %cst_3 : f32 to vector<8x1xf32>
    %12 = arith.mulf %10, %11 : vector<8x1xf32>
    %13 = vector.broadcast %12 : vector<8x1xf32> to vector<8x128xf32>
    %14 = arith.subf %0, %13 : vector<8x128xf32>
    %15 = vector.broadcast %8 : vector<1x128xf32> to vector<8x128xf32>
    %16 = arith.mulf %14, %15 : vector<8x128xf32>
    %17 = arith.mulf %16, %16 : vector<8x128xf32>
    %cst_4 = arith.constant dense<0.000000e+00> : vector<8xf32>
    %18 = vector.multi_reduction <add>, %17, %cst_4 [1] : vector<8x128xf32> to vector<8xf32>
    %19 = vector.shape_cast %18 : vector<8xf32> to vector<8x1xf32>
    %cst_5 = arith.constant 1.250000e-02 : f32
    %20 = vector.broadcast %cst_5 : f32 to vector<8x1xf32>
    %21 = arith.mulf %19, %20 : vector<8x1xf32>
    %cst_6 = arith.constant 9.99999974E-6 : f32
    %22 = vector.broadcast %cst_6 : f32 to vector<8x1xf32>
    %23 = arith.addf %21, %22 : vector<8x1xf32>
    %24 = math.rsqrt %23 : vector<8x1xf32>
    %25 = vector.broadcast %24 : vector<8x1xf32> to vector<8x128xf32>
    %26 = arith.mulf %16, %25 : vector<8x128xf32>
    %27 = vector.broadcast %2 : vector<1x128xf32> to vector<8x128xf32>
    %28 = arith.mulf %26, %27 : vector<8x128xf32>
    %29 = vector.broadcast %3 : vector<1x128xf32> to vector<8x128xf32>
    %30 = arith.addf %28, %29 : vector<8x128xf32>
    %31 = arith.truncf %30 : vector<8x128xf32> to vector<8x128xbf16>
    %c0_7 = arith.constant 0 : index
    %c0_8 = arith.constant 0 : index
    %32 = vector.load %arg2[%c0_7, %c0_8] : memref<128x384xbf16, #tpu.memory_space<vmem>>, vector<128x384xbf16>
    %cst_9 = arith.constant dense<0.000000e+00> : vector<8x384xf32>
    %33 = tpu.matmul %31, %32, %cst_9 {dimension_numbers = #tpu.dot_dimension_numbers<[1], [0], [0], [1], [0, 0, 1, 1], [], []>} : vector<8x128xbf16>, vector<128x384xbf16>, vector<8x384xf32> -> vector<8x384xf32>
    %34 = vector.extract_strided_slice %33 {offsets = [0, 0], sizes = [8, 128], strides = [1, 1]} : vector<8x384xf32> to vector<8x128xf32>
    %35 = vector.shape_cast %34 : vector<8x128xf32> to vector<1x8x128xf32>
    %36 = arith.truncf %35 : vector<1x8x128xf32> to vector<1x8x128xbf16>
    %37 = vector.extract_strided_slice %33 {offsets = [0, 128], sizes = [8, 128], strides = [1, 1]} : vector<8x384xf32> to vector<8x128xf32>
    %38 = vector.shape_cast %37 : vector<8x128xf32> to vector<1x8x128xf32>
    %39 = vector.extract_strided_slice %33 {offsets = [0, 256], sizes = [8, 128], strides = [1, 1]} : vector<8x384xf32> to vector<8x128xf32>
    %40 = vector.shape_cast %39 : vector<8x128xf32> to vector<1x8x128xf32>
    %c0_10 = arith.constant 0 : index
    %c0_11 = arith.constant 0 : index
    %41 = vector.load %arg8[%c0_10, %c0_11] : memref<80x128xf32, #tpu.memory_space<vmem>>, vector<80x128xf32>
    %42 = arith.truncf %41 : vector<80x128xf32> to vector<80x128xbf16>
    %43 = tpu.concatenate %38, %38, %38, %38, %38, %38, %38, %38, %38, %38 in 1 : vector<1x8x128xf32>, vector<1x8x128xf32>, vector<1x8x128xf32>, vector<1x8x128xf32>, vector<1x8x128xf32>, vector<1x8x128xf32>, vector<1x8x128xf32>, vector<1x8x128xf32>, vector<1x8x128xf32>, vector<1x8x128xf32> -> vector<1x80x128xf32>
    %44 = vector.shape_cast %41 : vector<80x128xf32> to vector<1x80x128xf32>
    %45 = arith.mulf %43, %44 : vector<1x80x128xf32>
    %46 = arith.truncf %45 : vector<1x80x128xf32> to vector<1x80x128xbf16>
    %47 = tpu.concatenate %40, %40, %40, %40, %40, %40, %40, %40, %40, %40 in 1 : vector<1x8x128xf32>, vector<1x8x128xf32>, vector<1x8x128xf32>, vector<1x8x128xf32>, vector<1x8x128xf32>, vector<1x8x128xf32>, vector<1x8x128xf32>, vector<1x8x128xf32>, vector<1x8x128xf32>, vector<1x8x128xf32> -> vector<1x80x128xf32>
    %48 = vector.shape_cast %41 : vector<80x128xf32> to vector<1x80x128xf32>
    %49 = arith.mulf %47, %48 : vector<1x80x128xf32>
    %50 = arith.truncf %49 : vector<1x80x128xf32> to vector<1x80x128xbf16>
    "tpu.trace_start"() <{level = 10 : i32, message = "btd,bjd->btj"}> : () -> ()
    %cst_12 = arith.constant dense<0.000000e+00> : vector<1x8x80xf32>
    %51 = tpu.matmul %36, %46, %cst_12 {dimension_numbers = #tpu.dot_dimension_numbers<[2], [2], [1], [1], [0, 0, 0, 1, 1, 1], [0], [0]>} : vector<1x8x128xbf16>, vector<1x80x128xbf16>, vector<1x8x80xf32> -> vector<1x8x80xf32>
    "tpu.trace_stop"() : () -> ()
    %cst_13 = arith.constant dense<0xFF800000> : vector<1x8xf32>
    %52 = vector.multi_reduction <maximumf>, %51, %cst_13 [2] : vector<1x8x80xf32> to vector<1x8xf32>
    %53 = vector.shape_cast %52 : vector<1x8xf32> to vector<1x8x1xf32>
    %54 = vector.broadcast %53 : vector<1x8x1xf32> to vector<1x8x80xf32>
    %55 = arith.subf %51, %54 : vector<1x8x80xf32>
    %56 = math.exp %55 : vector<1x8x80xf32>
    %57 = arith.truncf %56 : vector<1x8x80xf32> to vector<1x8x80xbf16>
    %58 = vector.shape_cast %57 : vector<1x8x80xbf16> to vector<8x80xbf16>
    %cst_14 = arith.constant dense<0.000000e+00> : vector<8x128xf32>
    %59 = tpu.matmul %58, %42, %cst_14 {dimension_numbers = #tpu.dot_dimension_numbers<[1], [0], [0], [1], [0, 0, 1, 1], [], []>} : vector<8x80xbf16>, vector<80x128xbf16>, vector<8x128xf32> -> vector<8x128xf32>
    %cst_15 = arith.constant 1.000000e+00 : f32
    %60 = vector.broadcast %cst_15 : f32 to vector<1x128xf32>
    %61 = arith.subf %60, %8 : vector<1x128xf32>
    %62 = vector.broadcast %61 : vector<1x128xf32> to vector<8x128xf32>
    %63 = arith.addf %59, %62 : vector<8x128xf32>
    %cst_16 = arith.constant 9.99999968E-21 : f32
    %64 = vector.broadcast %cst_16 : f32 to vector<8x128xf32>
    %65 = arith.addf %63, %64 : vector<8x128xf32>
    "tpu.trace_start"() <{level = 10 : i32, message = "btj,bjd->btd"}> : () -> ()
    %cst_17 = arith.constant dense<0.000000e+00> : vector<1x8x128xf32>
    %66 = tpu.matmul %57, %50, %cst_17 {dimension_numbers = #tpu.dot_dimension_numbers<[2], [1], [1], [2], [0, 0, 0, 1, 1, 2], [0], [0]>} : vector<1x8x80xbf16>, vector<1x80x128xbf16>, vector<1x8x128xf32> -> vector<1x8x128xf32>
    "tpu.trace_stop"() : () -> ()
    %67 = vector.shape_cast %66 : vector<1x8x128xf32> to vector<8x128xf32>
    %68 = tpu.reciprocal %65 {approx = true} : vector<8x128xf32> -> vector<8x128xf32>
    %69 = arith.mulf %67, %68 : vector<8x128xf32>
    %70 = arith.truncf %69 : vector<8x128xf32> to vector<8x128xbf16>
    %c0_18 = arith.constant 0 : index
    %c0_19 = arith.constant 0 : index
    %71 = vector.load %arg3[%c0_18, %c0_19] : memref<128x128xbf16, #tpu.memory_space<vmem>>, vector<128x128xbf16>
    %cst_20 = arith.constant dense<0.000000e+00> : vector<8x128xf32>
    %72 = tpu.matmul %70, %71, %cst_20 {dimension_numbers = #tpu.dot_dimension_numbers<[1], [0], [0], [1], [0, 0, 1, 1], [], []>} : vector<8x128xbf16>, vector<128x128xbf16>, vector<8x128xf32> -> vector<8x128xf32>
    %73 = vector.broadcast %4 : vector<1x128xf32> to vector<8x128xf32>
    %74 = arith.addf %72, %73 : vector<8x128xf32>
    %75 = arith.addf %0, %74 : vector<8x128xf32>
    %cst_21 = arith.constant dense<0.000000e+00> : vector<8xf32>
    %76 = vector.multi_reduction <add>, %75, %cst_21 [1] : vector<8x128xf32> to vector<8xf32>
    %77 = vector.shape_cast %76 : vector<8xf32> to vector<8x1xf32>
    %cst_22 = arith.constant 1.250000e-02 : f32
    %78 = vector.broadcast %cst_22 : f32 to vector<8x1xf32>
    %79 = arith.mulf %77, %78 : vector<8x1xf32>
    %80 = vector.broadcast %79 : vector<8x1xf32> to vector<8x128xf32>
    %81 = arith.subf %75, %80 : vector<8x128xf32>
    %82 = vector.broadcast %8 : vector<1x128xf32> to vector<8x128xf32>
    %83 = arith.mulf %81, %82 : vector<8x128xf32>
    %84 = arith.mulf %83, %83 : vector<8x128xf32>
    %cst_23 = arith.constant dense<0.000000e+00> : vector<8xf32>
    %85 = vector.multi_reduction <add>, %84, %cst_23 [1] : vector<8x128xf32> to vector<8xf32>
    %86 = vector.shape_cast %85 : vector<8xf32> to vector<8x1xf32>
    %cst_24 = arith.constant 1.250000e-02 : f32
    %87 = vector.broadcast %cst_24 : f32 to vector<8x1xf32>
    %88 = arith.mulf %86, %87 : vector<8x1xf32>
    %cst_25 = arith.constant 9.99999974E-6 : f32
    %89 = vector.broadcast %cst_25 : f32 to vector<8x1xf32>
    %90 = arith.addf %88, %89 : vector<8x1xf32>
    %91 = math.rsqrt %90 : vector<8x1xf32>
    %92 = vector.broadcast %91 : vector<8x1xf32> to vector<8x128xf32>
    %93 = arith.mulf %83, %92 : vector<8x128xf32>
    %94 = vector.broadcast %5 : vector<1x128xf32> to vector<8x128xf32>
    %95 = arith.mulf %93, %94 : vector<8x128xf32>
    %96 = vector.broadcast %6 : vector<1x128xf32> to vector<8x128xf32>
    %97 = arith.addf %95, %96 : vector<8x128xf32>
    %98 = arith.truncf %97 : vector<8x128xf32> to vector<8x128xbf16>
    %c0_26 = arith.constant 0 : index
    %c0_27 = arith.constant 0 : index
    %99 = vector.load %arg4[%c0_26, %c0_27] : memref<128x384xbf16, #tpu.memory_space<vmem>>, vector<128x384xbf16>
    %cst_28 = arith.constant dense<0.000000e+00> : vector<8x384xf32>
    %100 = tpu.matmul %98, %99, %cst_28 {dimension_numbers = #tpu.dot_dimension_numbers<[1], [0], [0], [1], [0, 0, 1, 1], [], []>} : vector<8x128xbf16>, vector<128x384xbf16>, vector<8x384xf32> -> vector<8x384xf32>
    %c0_29 = arith.constant 0 : index
    %c0_30 = arith.constant 0 : index
    %101 = vector.load %arg7[%c0_29, %c0_30] : memref<1x384xf32, #tpu.memory_space<vmem>>, vector<1x384xf32>
    %102 = vector.broadcast %101 : vector<1x384xf32> to vector<8x384xf32>
    %103 = arith.addf %100, %102 : vector<8x384xf32>
    %cst_31 = arith.constant 0.000000e+00 : f32
    %104 = vector.broadcast %cst_31 : f32 to vector<8x384xf32>
    %105 = arith.maximumf %103, %104 : vector<8x384xf32>
    %106 = arith.truncf %105 : vector<8x384xf32> to vector<8x384xbf16>
    %c0_32 = arith.constant 0 : index
    %c0_33 = arith.constant 0 : index
    %107 = vector.load %arg5[%c0_32, %c0_33] : memref<384x128xbf16, #tpu.memory_space<vmem>>, vector<384x128xbf16>
    %cst_34 = arith.constant dense<0.000000e+00> : vector<8x128xf32>
    %108 = tpu.matmul %106, %107, %cst_34 {dimension_numbers = #tpu.dot_dimension_numbers<[1], [0], [0], [1], [0, 0, 1, 1], [], []>} : vector<8x384xbf16>, vector<384x128xbf16>, vector<8x128xf32> -> vector<8x128xf32>
    %109 = vector.broadcast %7 : vector<1x128xf32> to vector<8x128xf32>
    %110 = arith.addf %108, %109 : vector<8x128xf32>
    %111 = arith.addf %75, %110 : vector<8x128xf32>
    %c0_35 = arith.constant 0 : index
    %c0_36 = arith.constant 0 : index
    %112 = vector.load %arg9[%c0_35, %c0_36] : memref<8x128xf32, #tpu.memory_space<vmem>>, vector<8x128xf32>
    tpu.vector_store %arg9[%c0_35, %c0_36], %111 {strides = array<i32>} : memref<8x128xf32, #tpu.memory_space<vmem>>, vector<8x128xf32>,
    return
  }
  func.func @transform_0(%arg0: i32) -> (i32, i32) {
    %c0_i32 = arith.constant 0 : i32
    %c0_i32_0 = arith.constant 0 : i32
    return %arg0, %c0_i32 : i32, i32
  }
  func.func @transform_1(%arg0: i32) -> (i32, i32) {
    %c0_i32 = arith.constant 0 : i32
    %c0_i32_0 = arith.constant 0 : i32
    %c0_i32_1 = arith.constant 0 : i32
    return %c0_i32, %c0_i32_0 : i32, i32
  }
  func.func @transform_2(%arg0: i32) -> (i32, i32) {
    %c0_i32 = arith.constant 0 : i32
    %c0_i32_0 = arith.constant 0 : i32
    %c0_i32_1 = arith.constant 0 : i32
    return %c0_i32, %c0_i32_0 : i32, i32
  }
  func.func @transform_3(%arg0: i32) -> (i32, i32) {
    %c0_i32 = arith.constant 0 : i32
    %c0_i32_0 = arith.constant 0 : i32
    %c0_i32_1 = arith.constant 0 : i32
    return %c0_i32, %c0_i32_0 : i32, i32
  }
  func.func @transform_4(%arg0: i32) -> (i32, i32) {
    %c0_i32 = arith.constant 0 : i32
    %c0_i32_0 = arith.constant 0 : i32
    %c0_i32_1 = arith.constant 0 : i32
    return %c0_i32, %c0_i32_0 : i32, i32
  }
  func.func @transform_5(%arg0: i32) -> (i32, i32) {
    %c0_i32 = arith.constant 0 : i32
    %c0_i32_0 = arith.constant 0 : i32
    %c0_i32_1 = arith.constant 0 : i32
    return %c0_i32, %c0_i32_0 : i32, i32
  }
  func.func @transform_6(%arg0: i32) -> (i32, i32) {
    %c0_i32 = arith.constant 0 : i32
    %c0_i32_0 = arith.constant 0 : i32
    %c0_i32_1 = arith.constant 0 : i32
    return %c0_i32, %c0_i32_0 : i32, i32
  }
  func.func @transform_7(%arg0: i32) -> (i32, i32) {
    %c0_i32 = arith.constant 0 : i32
    %c0_i32_0 = arith.constant 0 : i32
    %c0_i32_1 = arith.constant 0 : i32
    return %c0_i32, %c0_i32_0 : i32, i32
  }
  func.func @transform_8(%arg0: i32) -> (i32, i32) {
    %c0_i32 = arith.constant 0 : i32
    %c0_i32_0 = arith.constant 0 : i32
    return %arg0, %c0_i32 : i32, i32
  }
}

</mosaic_0001>

<llo_original>
// kernel: tpu_custom_call.1
$region0: #{tpu_custom_call.1}
  #allocation0 [shape = 'u32[]', space=smem, size = 0x4, offset = 0x4, fixed_abs, tag = 'smem constant byte address 0x4 - core index']
  #allocation1 [shape = 'u32[144,128]{1,0:T(1,128)}', space=vmem, size = 0x12000, scoped, tag = 'internal scratch']
  %s0 = inlined_call_operand.hbm [shape: f32[16,128], index: 0, kind: input, shape index: {}]
  %s1 = inlined_call_operand.hbm [shape: bf16[128,384], index: 1, kind: input, shape index: {}]
  %s2 = inlined_call_operand.hbm [shape: bf16[128,128], index: 2, kind: input, shape index: {}]
  %s3 = inlined_call_operand.hbm [shape: bf16[128,384], index: 3, kind: input, shape index: {}]
  %s4 = inlined_call_operand.hbm [shape: bf16[384,128], index: 4, kind: input, shape index: {}]
  %s5 = inlined_call_operand.vmem [shape: f32[8,128], index: 5, kind: input, shape index: {}]
  %s6 = inlined_call_operand.vmem [shape: f32[1,384], index: 6, kind: input, shape index: {}]
  %s7 = inlined_call_operand.hbm [shape: f32[80,128], index: 7, kind: input, shape index: {}]
  %s8 = inlined_call_operand.hbm [shape: f32[16,128], index: 8, kind: output, shape index: {}]
  %s9 = sld [smem:[#allocation0]]
  $region89: #{tpu_custom_call.1} parent=0
    _
  %s11 = ssub.s32 1, %s9
  %s12 = scalar_select 0, %s11, %s9
  $region1: #{tpu_custom_call.1} parent=0
    #allocation2 [shape = 'u8[8192]{0}', space=vmem, size = 0x2000, scoped, tag = 'input window, operand 0']
    #allocation3 [shape = 's32[2]{0}', space=sflag, size = 0x8, scoped, tag = 'scoped memory for tpu_custom_call.1']
    #allocation4 [shape = 's32[2]{0}', space=sflag, size = 0x8, scoped, tag = 'scoped memory for tpu_custom_call.1']
    #allocation5 [shape = 'u8[98304]{0}', space=vmem, size = 0x18000, scoped, tag = 'input window, operand 1, single buffered']
    #allocation6 [shape = 's32[1]{0}', space=sflag, size = 0x4, scoped, tag = 'scoped memory for tpu_custom_call.1']
    #allocation7 [shape = 'u8[32768]{0}', space=vmem, size = 0x8000, scoped, tag = 'input window, operand 2, single buffered']
    #allocation8 [shape = 'u8[98304]{0}', space=vmem, size = 0x18000, scoped, tag = 'input window, operand 3, single buffered']
    #allocation9 [shape = 's32[1]{0}', space=sflag, size = 0x4, scoped, tag = 'scoped memory for tpu_custom_call.1']
    #allocation10 [shape = 'u8[98304]{0}', space=vmem, size = 0x18000, scoped, tag = 'input window, operand 4, single buffered']
    #allocation11 [shape = 'u8[40960]{0}', space=vmem, size = 0xa000, scoped, tag = 'input window, operand 7, single buffered']
    #allocation12 [shape = 's32[1]{0}', space=sflag, size = 0x4, scoped, tag = 'scoped memory for tpu_custom_call.1']
    #allocation13 [shape = 'u8[8192]{0}', space=vmem, size = 0x2000, scoped, tag = 'output window, operand 0']
    %13 = vsyncpa [#allocation3], 0
    %s14 = scalar_lea.sflag [#allocation3], 1
    %15 = vsyncpa %s14, 0
    %16 = vsyncpa [#allocation6], 0
    %17 = vsyncpa [#allocation9], 0
    %18 = vsyncpa [#allocation12], 0
    %19 = vsyncpa [#allocation4], 0
    %s20 = scalar_lea.sflag [#allocation4], 1
    %21 = vsyncpa %s20, 0
    loop: start=0, step=1, limit=4
    $region2: #{tpu_custom_call.1} parent=1 // loop_pre_header
      _
    $region3: #{tpu_custom_call.1} parent=1 // loop_header
      %s23 = sphi 0, %s27
      %p24 = scmp.ge.s32.totalorder %s23, 4
      %s33 = sphi 0, %s35
      %s36 = sphi 0, %s33
      %s37 = sphi 0, %s36
      %s53 = sphi 0, %s37
      %s57 = sphi 0, %s57
      %s59 = sphi 0, %s57
      %s60 = sphi 0, %s59
      %s74 = sphi 0, %s60
      %s78 = sphi 0, %s78
      %s80 = sphi 0, %s78
      %s81 = sphi 0, %s80
      %s95 = sphi 0, %s81
      %s99 = sphi 0, %s99
      %s101 = sphi 0, %s99
      %s102 = sphi 0, %s101
      %s116 = sphi 0, %s102
      %s120 = sphi 0, %s120
      %s122 = sphi 0, %s120
      %s123 = sphi 0, %s122
      %s137 = sphi 0, %s123
      %s141 = sphi 0, %s141
      %s143 = sphi 0, %s141
      %s144 = sphi 0, %s143
      %s158 = sphi 0, %s144
      %s162 = sphi 0, %s162
      %s164 = sphi 0, %s162
      %s165 = sphi 0, %s164
      %s179 = sphi 0, %s165
      %s183 = sphi 0, %s183
      %s185 = sphi 0, %s183
      %s186 = sphi 0, %s185
      %s200 = sphi 0, %s186
      %s206 = sphi 0, %s208
      %s209 = sphi 0, %s206
      %s210 = sphi 0, %s209
      %s226 = sphi 0, %s210
    $region4: #{tpu_custom_call.1} parent=1 // loop_header_branch
      %26 = sbr.rel (%p24) target = $region8
    $region5: #{tpu_custom_call.1} parent=1 // loop_body
      %s28 = ssub.s32 %s23, 1
      %s29 = ssub.s32 %s23, 2
      %s30 = sadd.s32 %s23, 1
      %s31 = ssub.s32 %s23, %s30
      %p32 = scmp.eq.s32.totalorder %s31, 0
      %s34 = sadd.s32 %s33, 1
      %s35 = scalar_select %p32, %s33, %s34
      %p38 = pneg %p32
      %p39 = scmp.eq.s32.totalorder %s23, 1
      %p40 = por %p38, %p39
      %p41 = scmp.ne.s32.totalorder %s33, %s36
      %p42 = scmp.eq.s32.totalorder %s23, 0
      %p43 = por %p41, %p42
      %p44 = scmp.ne.s32.totalorder %s33, %s36
      %p45 = scmp.eq.s32.totalorder %s28, 1
      %p46 = por %p44, %p45
      %p47 = scmp.ne.s32.totalorder %s36, %s37
      %p48 = scmp.eq.s32.totalorder %s28, 0
      %p49 = por %p47, %p48
      %p50 = scmp.ne.s32.totalorder %s36, %s37
      %p51 = scmp.eq.s32.totalorder %s29, 1
      %p52 = por %p50, %p51
      %p54 = scmp.ne.s32.totalorder %s37, %s53
      %p55 = scmp.eq.s32.totalorder %s29, 0
      %p56 = por %p54, %p55
      %s58 = sadd.s32 %s57, 1
      %p61 = scmp.eq.s32.totalorder %s23, 1
      %p62 = scmp.ne.s32.totalorder %s57, %s59
      %p63 = scmp.eq.s32.totalorder %s23, 0
      %p64 = por %p62, %p63
      %p65 = scmp.ne.s32.totalorder %s57, %s59
      %p66 = scmp.eq.s32.totalorder %s28, 1
      %p67 = por %p65, %p66
      %p68 = scmp.ne.s32.totalorder %s59, %s60
      %p69 = scmp.eq.s32.totalorder %s28, 0
      %p70 = por %p68, %p69
      %p71 = scmp.ne.s32.totalorder %s59, %s60
      %p72 = scmp.eq.s32.totalorder %s29, 1
      %p73 = por %p71, %p72
      %p75 = scmp.ne.s32.totalorder %s60, %s74
      %p76 = scmp.eq.s32.totalorder %s29, 0
      %p77 = por %p75, %p76
      %s79 = sadd.s32 %s78, 1
      %p82 = scmp.eq.s32.totalorder %s23, 1
      %p83 = scmp.ne.s32.totalorder %s78, %s80
      %p84 = scmp.eq.s32.totalorder %s23, 0
      %p85 = por %p83, %p84
      %p86 = scmp.ne.s32.totalorder %s78, %s80
      %p87 = scmp.eq.s32.totalorder %s28, 1
      %p88 = por %p86, %p87
      %p89 = scmp.ne.s32.totalorder %s80, %s81
      %p90 = scmp.eq.s32.totalorder %s28, 0
      %p91 = por %p89, %p90
      %p92 = scmp.ne.s32.totalorder %s80, %s81
      %p93 = scmp.eq.s32.totalorder %s29, 1
      %p94 = por %p92, %p93
      %p96 = scmp.ne.s32.totalorder %s81, %s95
      %p97 = scmp.eq.s32.totalorder %s29, 0
      %p98 = por %p96, %p97
      %s100 = sadd.s32 %s99, 1
      %p103 = scmp.eq.s32.totalorder %s23, 1
      %p104 = scmp.ne.s32.totalorder %s99, %s101
      %p105 = scmp.eq.s32.totalorder %s23, 0
      %p106 = por %p104, %p105
      %p107 = scmp.ne.s32.totalorder %s99, %s101
      %p108 = scmp.eq.s32.totalorder %s28, 1
      %p109 = por %p107, %p108
      %p110 = scmp.ne.s32.totalorder %s101, %s102
      %p111 = scmp.eq.s32.totalorder %s28, 0
      %p112 = por %p110, %p111
      %p113 = scmp.ne.s32.totalorder %s101, %s102
      %p114 = scmp.eq.s32.totalorder %s29, 1
      %p115 = por %p113, %p114
      %p117 = scmp.ne.s32.totalorder %s102, %s116
      %p118 = scmp.eq.s32.totalorder %s29, 0
      %p119 = por %p117, %p118
      %s121 = sadd.s32 %s120, 1
      %p124 = scmp.eq.s32.totalorder %s23, 1
      %p125 = scmp.ne.s32.totalorder %s120, %s122
      %p126 = scmp.eq.s32.totalorder %s23, 0
      %p127 = por %p125, %p126
      %p128 = scmp.ne.s32.totalorder %s120, %s122
      %p129 = scmp.eq.s32.totalorder %s28, 1
      %p130 = por %p128, %p129
      %p131 = scmp.ne.s32.totalorder %s122, %s123
      %p132 = scmp.eq.s32.totalorder %s28, 0
      %p133 = por %p131, %p132
      %p134 = scmp.ne.s32.totalorder %s122, %s123
      %p135 = scmp.eq.s32.totalorder %s29, 1
      %p136 = por %p134, %p135
      %p138 = scmp.ne.s32.totalorder %s123, %s137
      %p139 = scmp.eq.s32.totalorder %s29, 0
      %p140 = por %p138, %p139
      %s142 = sadd.s32 %s141, 1
      %p145 = scmp.eq.s32.totalorder %s23, 1
      %p146 = scmp.ne.s32.totalorder %s141, %s143
      %p147 = scmp.eq.s32.totalorder %s23, 0
      %p148 = por %p146, %p147
      %p149 = scmp.ne.s32.totalorder %s141, %s143
      %p150 = scmp.eq.s32.totalorder %s28, 1
      %p151 = por %p149, %p150
      %p152 = scmp.ne.s32.totalorder %s143, %s144
      %p153 = scmp.eq.s32.totalorder %s28, 0
      %p154 = por %p152, %p153
      %p155 = scmp.ne.s32.totalorder %s143, %s144
      %p156 = scmp.eq.s32.totalorder %s29, 1
      %p157 = por %p155, %p156
      %p159 = scmp.ne.s32.totalorder %s144, %s158
      %p160 = scmp.eq.s32.totalorder %s29, 0
      %p161 = por %p159, %p160
      %s163 = sadd.s32 %s162, 1
      %p166 = scmp.eq.s32.totalorder %s23, 1
      %p167 = scmp.ne.s32.totalorder %s162, %s164
      %p168 = scmp.eq.s32.totalorder %s23, 0
      %p169 = por %p167, %p168
      %p170 = scmp.ne.s32.totalorder %s162, %s164
      %p171 = scmp.eq.s32.totalorder %s28, 1
      %p172 = por %p170, %p171
      %p173 = scmp.ne.s32.totalorder %s164, %s165
      %p174 = scmp.eq.s32.totalorder %s28, 0
      %p175 = por %p173, %p174
      %p176 = scmp.ne.s32.totalorder %s164, %s165
      %p177 = scmp.eq.s32.totalorder %s29, 1
      %p178 = por %p176, %p177
      %p180 = scmp.ne.s32.totalorder %s165, %s179
      %p181 = scmp.eq.s32.totalorder %s29, 0
      %p182 = por %p180, %p181
      %s184 = sadd.s32 %s183, 1
      %p187 = scmp.eq.s32.totalorder %s23, 1
      %p188 = scmp.ne.s32.totalorder %s183, %s185
      %p189 = scmp.eq.s32.totalorder %s23, 0
      %p190 = por %p188, %p189
      %p191 = scmp.ne.s32.totalorder %s183, %s185
      %p192 = scmp.eq.s32.totalorder %s28, 1
      %p193 = por %p191, %p192
      %p194 = scmp.ne.s32.totalorder %s185, %s186
      %p195 = scmp.eq.s32.totalorder %s28, 0
      %p196 = por %p194, %p195
      %p197 = scmp.ne.s32.totalorder %s185, %s186
      %p198 = scmp.eq.s32.totalorder %s29, 1
      %p199 = por %p197, %p198
      %p201 = scmp.ne.s32.totalorder %s186, %s200
      %p202 = scmp.eq.s32.totalorder %s29, 0
      %p203 = por %p201, %p202
      %s204 = ssub.s32 %s23, %s30
      %p205 = scmp.eq.s32.totalorder %s204, 0
      %s207 = sadd.s32 %s206, 1
      %s208 = scalar_select %p205, %s206, %s207
      %p211 = pneg %p205
      %p212 = scmp.eq.s32.totalorder %s23, 1
      %p213 = por %p211, %p212
      %p214 = scmp.ne.s32.totalorder %s206, %s209
      %p215 = scmp.eq.s32.totalorder %s23, 0
      %p216 = por %p214, %p215
      %p217 = scmp.ne.s32.totalorder %s206, %s209
      %p218 = scmp.eq.s32.totalorder %s28, 1
      %p219 = por %p217, %p218
      %p220 = scmp.ne.s32.totalorder %s209, %s210
      %p221 = scmp.eq.s32.totalorder %s28, 0
      %p222 = por %p220, %p221
      %p223 = scmp.ne.s32.totalorder %s209, %s210
      %p224 = scmp.eq.s32.totalorder %s29, 1
      %p225 = por %p223, %p224
      %p227 = scmp.ne.s32.totalorder %s210, %s226
      %p228 = scmp.eq.s32.totalorder %s29, 0
      %p229 = por %p227, %p228
      %p230 = scmp.le.s32.totalorder 1, %s23
      %p231 = scmp.lt.s32.totalorder %s23, 3
      %p232 = pnand %p230, %p231
      %p233 = pneg %p232
      // Predicated region
      $region9: #{tpu_custom_call.1} parent=5 // pred_check
        _
      $region10: #{tpu_custom_call.1} parent=5 // pred_check_branch
        %235 = sbr.rel (%p232) target = $region12
      $region11: #{tpu_custom_call.1} parent=5 // pred_region
        %s236 = ssub.s32 %s23, 1
        // Predicated region
        $region13: #{tpu_custom_call.1} parent=11 // pred_check
          %p237 = pneg %p70
        $region14: #{tpu_custom_call.1} parent=11 // pred_check_branch
          %239 = sbr.rel (%p237) target = $region16
        $region15: #{tpu_custom_call.1} parent=11 // pred_region
          %s241 = ssub.s32 3072, 3072
          %242 = vsyncadd [#allocation6], %s241
          %s243 = sshll.u32 [#allocation5], 4
          %s244 = int_to_ptr.vmem [resolvable:$true] %s243
          %249 = dma.hbm_to_vmem [thread:$0]  %s1, 3072, %s244, [#allocation6], 192, 192, 12
        $region16: #{tpu_custom_call.1} parent=11 // pred_fallthru
          _
        // Predicated region
        $region17: #{tpu_custom_call.1} parent=11 // pred_check
          %p250 = pneg %p91
        $region18: #{tpu_custom_call.1} parent=11 // pred_check_branch
          %252 = sbr.rel (%p250) target = $region20
        $region19: #{tpu_custom_call.1} parent=11 // pred_region
          %s254 = ssub.s32 1024, 1024
          %255 = vsyncadd [#allocation6], %s254
          %s256 = sshll.u32 [#allocation7], 4
          %s257 = int_to_ptr.vmem [resolvable:$true] %s256
          %262 = dma.hbm_to_vmem [thread:$0]  %s2, 1024, %s257, [#allocation6], 64, 64, 4
        $region20: #{tpu_custom_call.1} parent=11 // pred_fallthru
          _
        // Predicated region
        $region21: #{tpu_custom_call.1} parent=11 // pred_check
          %p263 = pneg %p112
        $region22: #{tpu_custom_call.1} parent=11 // pred_check_branch
          %265 = sbr.rel (%p263) target = $region24
        $region23: #{tpu_custom_call.1} parent=11 // pred_region
          %s267 = ssub.s32 3072, 3072
          %268 = vsyncadd [#allocation9], %s267
          %s269 = sshll.u32 [#allocation8], 4
          %s270 = int_to_ptr.vmem [resolvable:$true] %s269
          %275 = dma.hbm_to_vmem [thread:$0]  %s3, 3072, %s270, [#allocation9], 192, 192, 12
        $region24: #{tpu_custom_call.1} parent=11 // pred_fallthru
          _
        // Predicated region
        $region25: #{tpu_custom_call.1} parent=11 // pred_check
          %p276 = pneg %p133
        $region26: #{tpu_custom_call.1} parent=11 // pred_check_branch
          %278 = sbr.rel (%p276) target = $region28
        $region27: #{tpu_custom_call.1} parent=11 // pred_region
          %s280 = ssub.s32 3072, 3072
          %281 = vsyncadd [#allocation9], %s280
          %s282 = sshll.u32 [#allocation10], 4
          %s283 = int_to_ptr.vmem [resolvable:$true] %s282
          %288 = dma.hbm_to_vmem [thread:$0]  %s4, 3072, %s283, [#allocation9], 64, 64, 4
        $region28: #{tpu_custom_call.1} parent=11 // pred_fallthru
          _
        // Predicated region
        $region29: #{tpu_custom_call.1} parent=11 // pred_check
          %p289 = pneg %p154
        $region30: #{tpu_custom_call.1} parent=11 // pred_check_branch
          %291 = sbr.rel (%p289) target = $region32
        $region31: #{tpu_custom_call.1} parent=11 // pred_region
          _
        $region32: #{tpu_custom_call.1} parent=11 // pred_fallthru
          _
        // Predicated region
        $region33: #{tpu_custom_call.1} parent=11 // pred_check
          %p292 = pneg %p175
        $region34: #{tpu_custom_call.1} parent=11 // pred_check_branch
          %294 = sbr.rel (%p292) target = $region36
        $region35: #{tpu_custom_call.1} parent=11 // pred_region
          _
        $region36: #{tpu_custom_call.1} parent=11 // pred_fallthru
          _
        // Predicated region
        $region37: #{tpu_custom_call.1} parent=11 // pred_check
          %p295 = pneg %p196
        $region38: #{tpu_custom_call.1} parent=11 // pred_check_branch
          %297 = sbr.rel (%p295) target = $region40
        $region39: #{tpu_custom_call.1} parent=11 // pred_region
          %s299 = ssub.s32 1280, 1280
          %300 = vsyncadd [#allocation12], %s299
          %s301 = sshll.u32 [#allocation11], 4
          %s302 = int_to_ptr.vmem [resolvable:$true] %s301
          %307 = dma.hbm_to_vmem [thread:$0]  %s7, 1280, %s302, [#allocation12], 128, 128, 8
        $region40: #{tpu_custom_call.1} parent=11 // pred_fallthru
          _
      $region12: #{tpu_custom_call.1} parent=5 // pred_fallthru
        _
      %p308 = scmp.lt.s32.totalorder %s23, 2
      // Predicated region
      $region41: #{tpu_custom_call.1} parent=5 // pred_check
        %p309 = pneg %p308
      $region42: #{tpu_custom_call.1} parent=5 // pred_check_branch
        %311 = sbr.rel (%p309) target = $region44
      $region43: #{tpu_custom_call.1} parent=5 // pred_region
        // Predicated region
        $region45: #{tpu_custom_call.1} parent=43 // pred_check
          %p312 = pneg %p43
        $region46: #{tpu_custom_call.1} parent=43 // pred_check_branch
          %314 = sbr.rel (%p312) target = $region48
        $region47: #{tpu_custom_call.1} parent=43 // pred_region
          %s315 = sand.u32 %s33, 1
          %s316 = scalar_lea.sflag [#allocation3], %s315
          %s317 = sand.u32 %s33, 1
          %s318 = smul.addr %s317, 8
          %s319 = scalar_lea.vmem [#allocation2], %s318
          %s321 = ssub.s32 128, 128
          %322 = vsyncadd %s316, %s321
          %s323 = smul.addr %s23, 128
          %s324 = scalar_lea.hbm %s0, %s323
          %s326 = sshll.u32 %s319, 4
          %s327 = int_to_ptr.vmem [resolvable:$true] %s326
          %329 = dma.hbm_to_vmem [thread:$0]  %s324, 128, %s327, %s316
        $region48: #{tpu_custom_call.1} parent=43 // pred_fallthru
          _
      $region44: #{tpu_custom_call.1} parent=5 // pred_fallthru
        _
      %p330 = scmp.le.s32.totalorder 1, %s23
      %p331 = scmp.lt.s32.totalorder %s23, 3
      %p332 = pnand %p330, %p331
      %p333 = pneg %p332
      // Predicated region
      $region49: #{tpu_custom_call.1} parent=5 // pred_check
        _
      $region50: #{tpu_custom_call.1} parent=5 // pred_check_branch
        %335 = sbr.rel (%p332) target = $region52
      $region51: #{tpu_custom_call.1} parent=5 // pred_region
        %s336 = ssub.s32 %s23, 1
        %s337 = sand.u32 %s36, 1
        %s338 = scalar_lea.sflag [#allocation3], %s337
        %s339 = sand.u32 %s36, 1
        %s340 = smul.addr %s339, 8
        %s341 = scalar_lea.vmem [#allocation2], %s340
        // Predicated region
        $region53: #{tpu_custom_call.1} parent=51 // pred_check
          %p342 = pneg %p49
        $region54: #{tpu_custom_call.1} parent=51 // pred_check_branch
          %344 = sbr.rel (%p342) target = $region56
        $region55: #{tpu_custom_call.1} parent=51 // pred_region
          %345 = dma.done %s338, 128
        $region56: #{tpu_custom_call.1} parent=51 // pred_fallthru
          _
        // Predicated region
        $region57: #{tpu_custom_call.1} parent=51 // pred_check
          %p346 = pneg %p70
        $region58: #{tpu_custom_call.1} parent=51 // pred_check_branch
          %348 = sbr.rel (%p346) target = $region60
        $region59: #{tpu_custom_call.1} parent=51 // pred_region
          %349 = dma.done [#allocation6], 3072
        $region60: #{tpu_custom_call.1} parent=51 // pred_fallthru
          _
        // Predicated region
        $region61: #{tpu_custom_call.1} parent=51 // pred_check
          %p350 = pneg %p91
        $region62: #{tpu_custom_call.1} parent=51 // pred_check_branch
          %352 = sbr.rel (%p350) target = $region64
        $region63: #{tpu_custom_call.1} parent=51 // pred_region
          %353 = dma.done [#allocation6], 1024
        $region64: #{tpu_custom_call.1} parent=51 // pred_fallthru
          _
        // Predicated region
        $region65: #{tpu_custom_call.1} parent=51 // pred_check
          %p354 = pneg %p112
        $region66: #{tpu_custom_call.1} parent=51 // pred_check_branch
          %356 = sbr.rel (%p354) target = $region68
        $region67: #{tpu_custom_call.1} parent=51 // pred_region
          %357 = dma.done [#allocation9], 3072
        $region68: #{tpu_custom_call.1} parent=51 // pred_fallthru
          _
        // Predicated region
        $region69: #{tpu_custom_call.1} parent=51 // pred_check
          %p358 = pneg %p133
        $region70: #{tpu_custom_call.1} parent=51 // pred_check_branch
          %360 = sbr.rel (%p358) target = $region72
        $region71: #{tpu_custom_call.1} parent=51 // pred_region
          %361 = dma.done [#allocation9], 3072
        $region72: #{tpu_custom_call.1} parent=51 // pred_fallthru
          _
        // Predicated region
        $region73: #{tpu_custom_call.1} parent=51 // pred_check
          %p362 = pneg %p196
        $region74: #{tpu_custom_call.1} parent=51 // pred_check_branch
          %364 = sbr.rel (%p362) target = $region76
        $region75: #{tpu_custom_call.1} parent=51 // pred_region
          %365 = dma.done [#allocation12], 1280
        $region76: #{tpu_custom_call.1} parent=51 // pred_fallthru
          _
        %s366 = sand.u32 %s36, 1
        %s367 = scalar_lea.sflag [#allocation3], %s366
        %s368 = sand.u32 %s36, 1
        %s369 = smul.addr %s368, 8
        %s370 = scalar_lea.vmem [#allocation2], %s369
        %p371 = pneg %p49
        %p372 = pneg %p46
        %p373 = pneg %p70
        %p374 = pneg %p67
        %p375 = pneg %p91
        %p376 = pneg %p88
        %p377 = pneg %p112
        %p378 = pneg %p109
        %p379 = pneg %p133
        %p380 = pneg %p130
        %p381 = pneg %p154
        %p382 = pneg %p151
        %p383 = pneg %p175
        %p384 = pneg %p172
        %p385 = pneg %p196
        %p386 = pneg %p193
        %p387 = pneg %p222
        %p388 = pneg %p219
        %s389 = sand.u32 %s209, 1
        %s390 = scalar_lea.sflag [#allocation4], %s389
        %s391 = sand.u32 %s209, 1
        %s392 = smul.addr %s391, 8
        %s393 = scalar_lea.vmem [#allocation13], %s392
        %v395 = vld [vmem:[%s341] sm:$0xff]
        %v396 = vld [vmem:[%s5] sm:$0xff]
        %397 = vadd.xlane.f32.xlu0 %v395
        %v398 = vpop.xlane.xlu0 %397
        %v399 = vmul.f32 %v398, 0.0125
        %v400 = vsub.f32 %v395, %v399
        %v401 = vlaneseq
        %v402 = vshrl.u32 %v401, 7
        %v403 = vsub.s32 6, %v402
        %v404 = vrot.slane %v396, %v403
        %v405 = vmul.f32 %v400, %v404
        %v406 = vmul.f32 %v405, %v405
        %407 = vadd.xlane.f32.xlu0 %v406
        %v408 = vpop.xlane.xlu0 %407
        %v409 = vmul.f32 %v408, 0.0125
        %v410 = vadd.f32 %v409, 1e-05
        %v411 = vrsqrt.pop %v410
        %v412 = vmul.f32 %v405, %v411
        %v413 = vlaneseq
        %v414 = vshrl.u32 %v413, 7
        %v415 = vsub.s32 0, %v414
        %v416 = vrot.slane %v396, %v415
        %v417 = vmul.f32 %v412, %v416
        %v418 = vlaneseq
        %v419 = vshrl.u32 %v418, 7
        %v420 = vsub.s32 1, %v419
        %v421 = vrot.slane %v396, %v420
        %v422 = vadd.f32 %v417, %v421
        %v423 = vpack.c.bf16 %v422, %v422
        %v424 = vld [vmem:[#allocation5] sm:$0xff]
        %v425 = vld [vmem:[#allocation5 + $0x8] sm:$0xf]
        %v426 = vld [vmem:[#allocation5 + $0xc] sm:$0xff]
        %v427 = vld [vmem:[#allocation5 + $0x14] sm:$0xf]
        %v428 = vld [vmem:[#allocation5 + $0x18] sm:$0xff]
        %v429 = vld [vmem:[#allocation5 + $0x20] sm:$0xf]
        %v430 = vld [vmem:[#allocation5 + $0x24] sm:$0xff]
        %v431 = vld [vmem:[#allocation5 + $0x2c] sm:$0xf]
        %v432 = vld [vmem:[#allocation5 + $0x30] sm:$0xff]
        %v433 = vld [vmem:[#allocation5 + $0x38] sm:$0xf]
        %v434 = vld [vmem:[#allocation5 + $0x3c] sm:$0xff]
        %v435 = vld [vmem:[#allocation5 + $0x44] sm:$0xf]
        %v436 = vld [vmem:[#allocation5 + $0x48] sm:$0xff]
        %v437 = vld [vmem:[#allocation5 + $0x50] sm:$0xf]
        %v438 = vld [vmem:[#allocation5 + $0x54] sm:$0xff]
        %v439 = vld [vmem:[#allocation5 + $0x5c] sm:$0xf]
        %v440 = vld [vmem:[#allocation5 + $0x60] sm:$0xff]
        %v441 = vld [vmem:[#allocation5 + $0x68] sm:$0xf]
        %v442 = vld [vmem:[#allocation5 + $0x6c] sm:$0xff]
        %v443 = vld [vmem:[#allocation5 + $0x74] sm:$0xf]
        %v444 = vld [vmem:[#allocation5 + $0x78] sm:$0xff]
        %v445 = vld [vmem:[#allocation5 + $0x80] sm:$0xf]
        %v446 = vld [vmem:[#allocation5 + $0x84] sm:$0xff]
        %v447 = vld [vmem:[#allocation5 + $0x8c] sm:$0xf]
        %v448 = vld [vmem:[#allocation5 + $0x90] sm:$0xff]
        %v449 = vld [vmem:[#allocation5 + $0x98] sm:$0xf]
        %v450 = vld [vmem:[#allocation5 + $0x9c] sm:$0xff]
        %v451 = vld [vmem:[#allocation5 + $0xa4] sm:$0xf]
        %v452 = vld [vmem:[#allocation5 + $0xa8] sm:$0xff]
        %v453 = vld [vmem:[#allocation5 + $0xb0] sm:$0xf]
        %v454 = vld [vmem:[#allocation5 + $0xb4] sm:$0xff]
        %v455 = vld [vmem:[#allocation5 + $0xbc] sm:$0xf]
        %v488 = vunpack.c.l.b16 %v424
        %v489 = vunpack.c.h.b16 %v424
        %v490 = vunpack.c.l.b16 %v425
        %v491 = vunpack.c.l.b16 %v426
        %v492 = vunpack.c.h.b16 %v426
        %v493 = vunpack.c.l.b16 %v427
        %v494 = vunpack.c.l.b16 %v428
        %v495 = vunpack.c.h.b16 %v428
        %v496 = vunpack.c.l.b16 %v429
        %v497 = vunpack.c.l.b16 %v430
        %v498 = vunpack.c.h.b16 %v430
        %v499 = vunpack.c.l.b16 %v431
        %v500 = vunpack.c.l.b16 %v432
        %v501 = vunpack.c.h.b16 %v432
        %v502 = vunpack.c.l.b16 %v433
        %v503 = vunpack.c.l.b16 %v434
        %v504 = vunpack.c.h.b16 %v434
        %v505 = vunpack.c.l.b16 %v435
        %v506 = vunpack.c.l.b16 %v436
        %v507 = vunpack.c.h.b16 %v436
        %v508 = vunpack.c.l.b16 %v437
        %v509 = vunpack.c.l.b16 %v438
        %v510 = vunpack.c.h.b16 %v438
        %v511 = vunpack.c.l.b16 %v439
        %v512 = vunpack.c.l.b16 %v440
        %v513 = vunpack.c.h.b16 %v440
        %v514 = vunpack.c.l.b16 %v441
        %v515 = vunpack.c.l.b16 %v442
        %v516 = vunpack.c.h.b16 %v442
        %v517 = vunpack.c.l.b16 %v443
        %v518 = vunpack.c.l.b16 %v444
        %v519 = vunpack.c.h.b16 %v444
        %v520 = vunpack.c.l.b16 %v445
        %v521 = vunpack.c.l.b16 %v446
        %v522 = vunpack.c.h.b16 %v446
        %v523 = vunpack.c.l.b16 %v447
        %v524 = vunpack.c.l.b16 %v448
        %v525 = vunpack.c.h.b16 %v448
        %v526 = vunpack.c.l.b16 %v449
        %v527 = vunpack.c.l.b16 %v450
        %v528 = vunpack.c.h.b16 %v450
        %v529 = vunpack.c.l.b16 %v451
        %v530 = vunpack.c.l.b16 %v452
        %v531 = vunpack.c.h.b16 %v452
        %v532 = vunpack.c.l.b16 %v453
        %v533 = vunpack.c.l.b16 %v454
        %v534 = vunpack.c.h.b16 %v454
        %v535 = vunpack.c.l.b16 %v455
        %v536 = vpack.c.b16 %v491, %v488
        %v537 = vpack.c.b16 %v492, %v489
        %v538 = vpack.c.b16 %v493, %v490
        %v539 = vpack.c.b16 %v497, %v494
        %v540 = vpack.c.b16 %v498, %v495
        %v541 = vpack.c.b16 %v499, %v496
        %v542 = vpack.c.b16 %v503, %v500
        %v543 = vpack.c.b16 %v504, %v501
        %v544 = vpack.c.b16 %v505, %v502
        %v545 = vpack.c.b16 %v509, %v506
        %v546 = vpack.c.b16 %v510, %v507
        %v547 = vpack.c.b16 %v511, %v508
        %v548 = vpack.c.b16 %v515, %v512
        %v549 = vpack.c.b16 %v516, %v513
        %v550 = vpack.c.b16 %v517, %v514
        %v551 = vpack.c.b16 %v521, %v518
        %v552 = vpack.c.b16 %v522, %v519
        %v553 = vpack.c.b16 %v523, %v520
        %v554 = vpack.c.b16 %v527, %v524
        %v555 = vpack.c.b16 %v528, %v525
        %v556 = vpack.c.b16 %v529, %v526
        %v557 = vpack.c.b16 %v533, %v530
        %v558 = vpack.c.b16 %v534, %v531
        %v559 = vpack.c.b16 %v535, %v532
        %584 = vmatprep.subr.bf16.mxu0 %v537
        %585 = vmatpush1.bf16.msra.mxu0 %v536
        %586 = vmatprep.subr.bf16.mxu0 %v540
        %587 = vmatpush1.bf16.msra.mxu0 %v539
        %588 = vmatprep.subr.bf16.mxu0 %v543
        %589 = vmatpush1.bf16.msra.mxu0 %v542
        %590 = vmatprep.subr.bf16.mxu0 %v546
        %591 = vmatpush1.bf16.msra.mxu0 %v545
        %592 = vmatprep.subr.bf16.mxu0 %v549
        %593 = vmatpush1.bf16.msra.mxu0 %v548
        %594 = vmatprep.subr.bf16.mxu0 %v552
        %595 = vmatpush1.bf16.msra.mxu0 %v551
        %596 = vmatprep.subr.bf16.mxu0 %v555
        %597 = vmatpush1.bf16.msra.mxu0 %v554
        %598 = vmatprep.subr.bf16.mxu0 %v558
        %599 = vmatpush1.bf16.msra.mxu0 %v557
        %600 = vmatprep.subr.bf16.mxu0 0
        %601 = vmatpush1.bf16.msra.mxu0 0
        %602 = vmatprep.subr.bf16.mxu0 0
        %603 = vmatpush1.bf16.msra.mxu0 0
        %604 = vmatprep.subr.bf16.mxu0 0
        %605 = vmatpush1.bf16.msra.mxu0 0
        %606 = vmatprep.subr.bf16.mxu0 0
        %607 = vmatpush1.bf16.msra.mxu0 0
        %608 = vmatprep.subr.bf16.mxu0 0
        %609 = vmatpush1.bf16.msra.mxu0 0
        %610 = vmatprep.subr.bf16.mxu0 0
        %611 = vmatpush1.bf16.msra.mxu0 0
        %612 = vmatprep.subr.bf16.mxu0 0
        %613 = vmatpush1.bf16.msra.mxu0 0
        %614 = vmatprep.subr.bf16.mxu0 0
        %615 = vmatpush1.bf16.msra.mxu0 0
        %616 = vmatprep.mubr.bf16.mxu0 0
        %617 = vmatmul.mubr.bf16.gmra.mrb[0].mxu0 %v423
        %v618 = vpop.f32.mrb[0].mxu0
        %v619 = vadd.f32 0.0, %v618
        %v620 = vpop.f32.mrb[0].mxu0
        %v621 = vadd.f32 0.0, %v620
        %v622 = vpop.f32.mrb[0].mxu0
        %v623 = vpop.f32.mrb[0].mxu0
        %624 = vdwg.mxu0
        %625 = vmatprep.subr.bf16.mxu0 0
        %626 = vmatpush1.bf16.msra.mxu0 %v538
        %627 = vmatprep.subr.bf16.mxu0 0
        %628 = vmatpush1.bf16.msra.mxu0 %v541
        %629 = vmatprep.subr.bf16.mxu0 0
        %630 = vmatpush1.bf16.msra.mxu0 %v544
        %631 = vmatprep.subr.bf16.mxu0 0
        %632 = vmatpush1.bf16.msra.mxu0 %v547
        %633 = vmatprep.subr.bf16.mxu0 0
        %634 = vmatpush1.bf16.msra.mxu0 %v550
        %635 = vmatprep.subr.bf16.mxu0 0
        %636 = vmatpush1.bf16.msra.mxu0 %v553
        %637 = vmatprep.subr.bf16.mxu0 0
        %638 = vmatpush1.bf16.msra.mxu0 %v556
        %639 = vmatprep.subr.bf16.mxu0 0
        %640 = vmatpush1.bf16.msra.mxu0 %v559
        %641 = vmatprep.subr.bf16.mxu0 0
        %642 = vmatpush1.bf16.msra.mxu0 0
        %643 = vmatprep.subr.bf16.mxu0 0
        %644 = vmatpush1.bf16.msra.mxu0 0
        %645 = vmatprep.subr.bf16.mxu0 0
        %646 = vmatpush1.bf16.msra.mxu0 0
        %647 = vmatprep.subr.bf16.mxu0 0
        %648 = vmatpush1.bf16.msra.mxu0 0
        %649 = vmatprep.subr.bf16.mxu0 0
        %650 = vmatpush1.bf16.msra.mxu0 0
        %651 = vmatprep.subr.bf16.mxu0 0
        %652 = vmatpush1.bf16.msra.mxu0 0
        %653 = vmatprep.subr.bf16.mxu0 0
        %654 = vmatpush1.bf16.msra.mxu0 0
        %655 = vmatprep.subr.bf16.mxu0 0
        %656 = vmatpush1.bf16.msra.mxu0 0
        %657 = vmatprep.mubr.bf16.mxu0 0
        %658 = vmatmul.mubr.bf16.gmra.mrb[0].mxu0 %v423
        %v659 = vpop.f32.mrb[0].mxu0
        %v660 = vadd.f32 0.0, %v659
        %v661 = vpop.f32.mrb[0].mxu0
        %v662 = vpop.f32.mrb[0].mxu0
        %v663 = vpop.f32.mrb[0].mxu0
        %664 = vdwg.mxu0
        %v665 = vpack.c.bf16 %v619, %v619
        %v666 = vld [vmem:[#allocation11] sm:$0xff]
        %v667 = vld [vmem:[#allocation11 + $0x8] sm:$0xff]
        %v668 = vld [vmem:[#allocation11 + $0x10] sm:$0xff]
        %v669 = vld [vmem:[#allocation11 + $0x18] sm:$0xff]
        %v670 = vld [vmem:[#allocation11 + $0x20] sm:$0xff]
        %v671 = vld [vmem:[#allocation11 + $0x28] sm:$0xff]
        %v672 = vld [vmem:[#allocation11 + $0x30] sm:$0xff]
        %v673 = vld [vmem:[#allocation11 + $0x38] sm:$0xff]
        %v674 = vld [vmem:[#allocation11 + $0x40] sm:$0xff]
        %v675 = vld [vmem:[#allocation11 + $0x48] sm:$0xff]
        %v676 = vpack.c.bf16 %v667, %v666
        %v677 = vpack.c.bf16 %v669, %v668
        %v678 = vpack.c.bf16 %v671, %v670
        %v679 = vpack.c.bf16 %v673, %v672
        %v680 = vpack.c.bf16 %v675, %v674
        %v681 = vmul.f32 %v621, %v666
        %v682 = vmul.f32 %v621, %v667
        %v683 = vmul.f32 %v621, %v668
        %v684 = vmul.f32 %v621, %v669
        %v685 = vmul.f32 %v621, %v670
        %v686 = vmul.f32 %v621, %v671
        %v687 = vmul.f32 %v621, %v672
        %v688 = vmul.f32 %v621, %v673
        %v689 = vmul.f32 %v621, %v674
        %v690 = vmul.f32 %v621, %v675
        %v691 = vpack.c.bf16 %v682, %v681
        %v692 = vpack.c.bf16 %v684, %v683
        %v693 = vpack.c.bf16 %v686, %v685
        %v694 = vpack.c.bf16 %v688, %v687
        %v695 = vpack.c.bf16 %v690, %v689
        %v696 = vmul.f32 %v660, %v666
        %v697 = vmul.f32 %v660, %v667
        %v698 = vmul.f32 %v660, %v668
        %v699 = vmul.f32 %v660, %v669
        %v700 = vmul.f32 %v660, %v670
        %v701 = vmul.f32 %v660, %v671
        %v702 = vmul.f32 %v660, %v672
        %v703 = vmul.f32 %v660, %v673
        %v704 = vmul.f32 %v660, %v674
        %v705 = vmul.f32 %v660, %v675
        %v706 = vpack.c.bf16 %v697, %v696
        %v707 = vpack.c.bf16 %v699, %v698
        %v708 = vpack.c.bf16 %v701, %v700
        %v709 = vpack.c.bf16 %v703, %v702
        %v710 = vpack.c.bf16 %v705, %v704
        %711 = vmatprep.subr.bf16.mxu0 0
        %712 = vmatpush1.bf16.xpose.msra.mxu0 %v691
        %713 = vmatprep.subr.bf16.mxu0 0
        %714 = vmatpush1.bf16.xpose.msra.mxu0 %v692
        %715 = vmatprep.subr.bf16.mxu0 0
        %716 = vmatpush1.bf16.xpose.msra.mxu0 %v693
        %717 = vmatprep.subr.bf16.mxu0 0
        %718 = vmatpush1.bf16.xpose.msra.mxu0 %v694
        %719 = vmatprep.subr.bf16.mxu0 0
        %720 = vmatpush1.bf16.xpose.msra.mxu0 %v695
        %721 = vmatprep.subr.bf16.mxu0 0
        %722 = vmatpush1.bf16.xpose.msra.mxu0 0
        %723 = vmatprep.subr.bf16.mxu0 0
        %724 = vmatpush1.bf16.xpose.msra.mxu0 0
        %725 = vmatprep.subr.bf16.mxu0 0
        %726 = vmatpush1.bf16.xpose.msra.mxu0 0
        %727 = vmatprep.subr.bf16.mxu0 0
        %728 = vmatpush1.bf16.xpose.msra.mxu0 0
        %729 = vmatprep.subr.bf16.mxu0 0
        %730 = vmatpush1.bf16.xpose.msra.mxu0 0
        %731 = vmatprep.subr.bf16.mxu0 0
        %732 = vmatpush1.bf16.xpose.msra.mxu0 0
        %733 = vmatprep.subr.bf16.mxu0 0
        %734 = vmatpush1.bf16.xpose.msra.mxu0 0
        %735 = vmatprep.subr.bf16.mxu0 0
        %736 = vmatpush1.bf16.xpose.msra.mxu0 0
        %737 = vmatprep.subr.bf16.mxu0 0
        %738 = vmatpush1.bf16.xpose.msra.mxu0 0
        %739 = vmatprep.subr.bf16.mxu0 0
        %740 = vmatpush1.bf16.xpose.msra.mxu0 0
        %741 = vmatprep.subr.bf16.mxu0 0
        %742 = vmatpush1.bf16.xpose.msra.mxu0 0
        %743 = vmatprep.mubr.bf16.mxu0 0
        %744 = vmatmul.mubr.bf16.gmra.mrb[0].mxu0 %v665
        %v745 = vpop.f32.mrb[0].mxu0
        %v746 = vadd.f32 0.0, %v745
        %v747 = vpop.f32.mrb[0].mxu0
        %v748 = vpop.f32.mrb[0].mxu0
        %v749 = vpop.f32.mrb[0].mxu0
        %750 = vdwg.mxu0
        %vm751 = vcmask 654336
        %v752 = vsel %vm751, %v746, -inf
        %753 = vmax.xlane.f32.xlu0 %v752
        %v754 = vpop.xlane.xlu0 %753
        %v755 = vsub.f32 %v746, %v754
        %v756 = vmul.f32 %v755, 1.442695
        %v757 = vpow.pop %v756
        %v758 = vpack.c.bf16 %v757, %v757
        %v759 = vsub.f32 1.0, %v396
        %v760 = vlaneseq
        %v761 = vshrl.u32 %v760, 7
        %v762 = vsub.s32 6, %v761
        %v763 = vrot.slane %v759, %v762
        %v765 = vsel %vm751, %v758, 0
        %767 = vmatprep.subr.bf16.mxu0 0
        %768 = vmatpush1.bf16.msra.mxu0 %v676
        %769 = vmatprep.subr.bf16.mxu0 0
        %770 = vmatpush1.bf16.msra.mxu0 %v677
        %771 = vmatprep.subr.bf16.mxu0 0
        %772 = vmatpush1.bf16.msra.mxu0 %v678
        %773 = vmatprep.subr.bf16.mxu0 0
        %774 = vmatpush1.bf16.msra.mxu0 %v679
        %775 = vmatprep.subr.bf16.mxu0 0
        %776 = vmatpush1.bf16.msra.mxu0 %v680
        %777 = vmatprep.subr.bf16.mxu0 0
        %778 = vmatpush1.bf16.msra.mxu0 0
        %779 = vmatprep.subr.bf16.mxu0 0
        %780 = vmatpush1.bf16.msra.mxu0 0
        %781 = vmatprep.subr.bf16.mxu0 0
        %782 = vmatpush1.bf16.msra.mxu0 0
        %783 = vmatprep.subr.bf16.mxu0 0
        %784 = vmatpush1.bf16.msra.mxu0 0
        %785 = vmatprep.subr.bf16.mxu0 0
        %786 = vmatpush1.bf16.msra.mxu0 0
        %787 = vmatprep.subr.bf16.mxu0 0
        %788 = vmatpush1.bf16.msra.mxu0 0
        %789 = vmatprep.subr.bf16.mxu0 0
        %790 = vmatpush1.bf16.msra.mxu0 0
        %791 = vmatprep.subr.bf16.mxu0 0
        %792 = vmatpush1.bf16.msra.mxu0 0
        %793 = vmatprep.subr.bf16.mxu0 0
        %794 = vmatpush1.bf16.msra.mxu0 0
        %795 = vmatprep.subr.bf16.mxu0 0
        %796 = vmatpush1.bf16.msra.mxu0 0
        %797 = vmatprep.subr.bf16.mxu0 0
        %798 = vmatpush1.bf16.msra.mxu0 0
        %799 = vmatprep.mubr.bf16.mxu0 0
        %800 = vmatmul.mubr.bf16.gmra.mrb[0].mxu0 %v765
        %v801 = vpop.f32.mrb[0].mxu0
        %v802 = vadd.f32 %v763, %v801
        %v803 = vpop.f32.mrb[0].mxu0
        %v804 = vpop.f32.mrb[0].mxu0
        %v805 = vpop.f32.mrb[0].mxu0
        %806 = vdwg.mxu0
        %v807 = vadd.f32 %v802, 1e-20
        %808 = vmatprep.subr.bf16.mxu0 0
        %809 = vmatpush1.bf16.msra.mxu0 %v706
        %810 = vmatprep.subr.bf16.mxu0 0
        %811 = vmatpush1.bf16.msra.mxu0 %v707
        %812 = vmatprep.subr.bf16.mxu0 0
        %813 = vmatpush1.bf16.msra.mxu0 %v708
        %814 = vmatprep.subr.bf16.mxu0 0
        %815 = vmatpush1.bf16.msra.mxu0 %v709
        %816 = vmatprep.subr.bf16.mxu0 0
        %817 = vmatpush1.bf16.msra.mxu0 %v710
        %818 = vmatprep.subr.bf16.mxu0 0
        %819 = vmatpush1.bf16.msra.mxu0 0
        %820 = vmatprep.subr.bf16.mxu0 0
        %821 = vmatpush1.bf16.msra.mxu0 0
        %822 = vmatprep.subr.bf16.mxu0 0
        %823 = vmatpush1.bf16.msra.mxu0 0
        %824 = vmatprep.subr.bf16.mxu0 0
        %825 = vmatpush1.bf16.msra.mxu0 0
        %826 = vmatprep.subr.bf16.mxu0 0
        %827 = vmatpush1.bf16.msra.mxu0 0
        %828 = vmatprep.subr.bf16.mxu0 0
        %829 = vmatpush1.bf16.msra.mxu0 0
        %830 = vmatprep.subr.bf16.mxu0 0
        %831 = vmatpush1.bf16.msra.mxu0 0
        %832 = vmatprep.subr.bf16.mxu0 0
        %833 = vmatpush1.bf16.msra.mxu0 0
        %834 = vmatprep.subr.bf16.mxu0 0
        %835 = vmatpush1.bf16.msra.mxu0 0
        %836 = vmatprep.subr.bf16.mxu0 0
        %837 = vmatpush1.bf16.msra.mxu0 0
        %838 = vmatprep.subr.bf16.mxu0 0
        %839 = vmatpush1.bf16.msra.mxu0 0
        %840 = vmatprep.mubr.bf16.mxu0 0
        %841 = vmatmul.mubr.bf16.gmra.mrb[0].mxu0 %v765
        %v842 = vpop.f32.mrb[0].mxu0
        %v843 = vadd.f32 0.0, %v842
        %v844 = vpop.f32.mrb[0].mxu0
        %v845 = vpop.f32.mrb[0].mxu0
        %v846 = vpop.f32.mrb[0].mxu0
        %847 = vdwg.mxu0
        %v848 = vrcp.pop %v807
        %v849 = vmul.f32 %v843, %v848
        %v850 = vpack.c.bf16 %v849, %v849
        %v851 = vld [vmem:[#allocation7] sm:$0xf]
        %v852 = vld [vmem:[#allocation7 + $0x4] sm:$0xf]
        %v853 = vld [vmem:[#allocation7 + $0x8] sm:$0xf]
        %v854 = vld [vmem:[#allocation7 + $0xc] sm:$0xf]
        %v855 = vld [vmem:[#allocation7 + $0x10] sm:$0xf]
        %v856 = vld [vmem:[#allocation7 + $0x14] sm:$0xf]
        %v857 = vld [vmem:[#allocation7 + $0x18] sm:$0xf]
        %v858 = vld [vmem:[#allocation7 + $0x1c] sm:$0xf]
        %v859 = vld [vmem:[#allocation7 + $0x20] sm:$0xf]
        %v860 = vld [vmem:[#allocation7 + $0x24] sm:$0xf]
        %v861 = vld [vmem:[#allocation7 + $0x28] sm:$0xf]
        %v862 = vld [vmem:[#allocation7 + $0x2c] sm:$0xf]
        %v863 = vld [vmem:[#allocation7 + $0x30] sm:$0xf]
        %v864 = vld [vmem:[#allocation7 + $0x34] sm:$0xf]
        %v865 = vld [vmem:[#allocation7 + $0x38] sm:$0xf]
        %v866 = vld [vmem:[#allocation7 + $0x3c] sm:$0xf]
        %v867 = vlaneseq
        %v868 = vshrl.u32 %v867, 7
        %v869 = vsub.s32 2, %v868
        %v870 = vrot.slane %v396, %v869
        %v887 = vunpack.c.l.b16 %v851
        %v888 = vunpack.c.l.b16 %v852
        %v889 = vunpack.c.l.b16 %v853
        %v890 = vunpack.c.l.b16 %v854
        %v891 = vunpack.c.l.b16 %v855
        %v892 = vunpack.c.l.b16 %v856
        %v893 = vunpack.c.l.b16 %v857
        %v894 = vunpack.c.l.b16 %v858
        %v895 = vunpack.c.l.b16 %v859
        %v896 = vunpack.c.l.b16 %v860
        %v897 = vunpack.c.l.b16 %v861
        %v898 = vunpack.c.l.b16 %v862
        %v899 = vunpack.c.l.b16 %v863
        %v900 = vunpack.c.l.b16 %v864
        %v901 = vunpack.c.l.b16 %v865
        %v902 = vunpack.c.l.b16 %v866
        %v903 = vpack.c.b16 %v888, %v887
        %v904 = vpack.c.b16 %v890, %v889
        %v905 = vpack.c.b16 %v892, %v891
        %v906 = vpack.c.b16 %v894, %v893
        %v907 = vpack.c.b16 %v896, %v895
        %v908 = vpack.c.b16 %v898, %v897
        %v909 = vpack.c.b16 %v900, %v899
        %v910 = vpack.c.b16 %v902, %v901
        %919 = vmatprep.subr.bf16.mxu0 0
        %920 = vmatpush1.bf16.msra.mxu0 %v903
        %921 = vmatprep.subr.bf16.mxu0 0
        %922 = vmatpush1.bf16.msra.mxu0 %v904
        %923 = vmatprep.subr.bf16.mxu0 0
        %924 = vmatpush1.bf16.msra.mxu0 %v905
        %925 = vmatprep.subr.bf16.mxu0 0
        %926 = vmatpush1.bf16.msra.mxu0 %v906
        %927 = vmatprep.subr.bf16.mxu0 0
        %928 = vmatpush1.bf16.msra.mxu0 %v907
        %929 = vmatprep.subr.bf16.mxu0 0
        %930 = vmatpush1.bf16.msra.mxu0 %v908
        %931 = vmatprep.subr.bf16.mxu0 0
        %932 = vmatpush1.bf16.msra.mxu0 %v909
        %933 = vmatprep.subr.bf16.mxu0 0
        %934 = vmatpush1.bf16.msra.mxu0 %v910
        %935 = vmatprep.subr.bf16.mxu0 0
        %936 = vmatpush1.bf16.msra.mxu0 0
        %937 = vmatprep.subr.bf16.mxu0 0
        %938 = vmatpush1.bf16.msra.mxu0 0
        %939 = vmatprep.subr.bf16.mxu0 0
        %940 = vmatpush1.bf16.msra.mxu0 0
        %941 = vmatprep.subr.bf16.mxu0 0
        %942 = vmatpush1.bf16.msra.mxu0 0
        %943 = vmatprep.subr.bf16.mxu0 0
        %944 = vmatpush1.bf16.msra.mxu0 0
        %945 = vmatprep.subr.bf16.mxu0 0
        %946 = vmatpush1.bf16.msra.mxu0 0
        %947 = vmatprep.subr.bf16.mxu0 0
        %948 = vmatpush1.bf16.msra.mxu0 0
        %949 = vmatprep.subr.bf16.mxu0 0
        %950 = vmatpush1.bf16.msra.mxu0 0
        %951 = vmatprep.mubr.bf16.mxu0 0
        %952 = vmatmul.mubr.bf16.gmra.mrb[0].mxu0 %v850
        %v953 = vpop.f32.mrb[0].mxu0
        %v954 = vadd.f32 %v870, %v953
        %v955 = vpop.f32.mrb[0].mxu0
        %v956 = vpop.f32.mrb[0].mxu0
        %v957 = vpop.f32.mrb[0].mxu0
        %958 = vdwg.mxu0
        %v959 = vadd.f32 %v395, %v954
        %960 = vadd.xlane.f32.xlu0 %v959
        %v961 = vpop.xlane.xlu0 %960
        %v962 = vmul.f32 %v961, 0.0125
        %v963 = vsub.f32 %v959, %v962
        %v964 = vmul.f32 %v963, %v404
        %v965 = vmul.f32 %v964, %v964
        %966 = vadd.xlane.f32.xlu0 %v965
        %v967 = vpop.xlane.xlu0 %966
        %v968 = vmul.f32 %v967, 0.0125
        %v969 = vadd.f32 %v968, 1e-05
        %v970 = vrsqrt.pop %v969
        %v971 = vmul.f32 %v964, %v970
        %v972 = vlaneseq
        %v973 = vshrl.u32 %v972, 7
        %v974 = vsub.s32 3, %v973
        %v975 = vrot.slane %v396, %v974
        %v976 = vmul.f32 %v971, %v975
        %v977 = vlaneseq
        %v978 = vshrl.u32 %v977, 7
        %v979 = vsub.s32 4, %v978
        %v980 = vrot.slane %v396, %v979
        %v981 = vadd.f32 %v976, %v980
        %v982 = vpack.c.bf16 %v981, %v981
        %v983 = vld [vmem:[#allocation8] sm:$0xff]
        %v984 = vld [vmem:[#allocation8 + $0x8] sm:$0xf]
        %v985 = vld [vmem:[#allocation8 + $0xc] sm:$0xff]
        %v986 = vld [vmem:[#allocation8 + $0x14] sm:$0xf]
        %v987 = vld [vmem:[#allocation8 + $0x18] sm:$0xff]
        %v988 = vld [vmem:[#allocation8 + $0x20] sm:$0xf]
        %v989 = vld [vmem:[#allocation8 + $0x24] sm:$0xff]
        %v990 = vld [vmem:[#allocation8 + $0x2c] sm:$0xf]
        %v991 = vld [vmem:[#allocation8 + $0x30] sm:$0xff]
        %v992 = vld [vmem:[#allocation8 + $0x38] sm:$0xf]
        %v993 = vld [vmem:[#allocation8 + $0x3c] sm:$0xff]
        %v994 = vld [vmem:[#allocation8 + $0x44] sm:$0xf]
        %v995 = vld [vmem:[#allocation8 + $0x48] sm:$0xff]
        %v996 = vld [vmem:[#allocation8 + $0x50] sm:$0xf]
        %v997 = vld [vmem:[#allocation8 + $0x54] sm:$0xff]
        %v998 = vld [vmem:[#allocation8 + $0x5c] sm:$0xf]
        %v999 = vld [vmem:[#allocation8 + $0x60] sm:$0xff]
        %v1000 = vld [vmem:[#allocation8 + $0x68] sm:$0xf]
        %v1001 = vld [vmem:[#allocation8 + $0x6c] sm:$0xff]
        %v1002 = vld [vmem:[#allocation8 + $0x74] sm:$0xf]
        %v1003 = vld [vmem:[#allocation8 + $0x78] sm:$0xff]
        %v1004 = vld [vmem:[#allocation8 + $0x80] sm:$0xf]
        %v1005 = vld [vmem:[#allocation8 + $0x84] sm:$0xff]
        %v1006 = vld [vmem:[#allocation8 + $0x8c] sm:$0xf]
        %v1007 = vld [vmem:[#allocation8 + $0x90] sm:$0xff]
        %v1008 = vld [vmem:[#allocation8 + $0x98] sm:$0xf]
        %v1009 = vld [vmem:[#allocation8 + $0x9c] sm:$0xff]
        %v1010 = vld [vmem:[#allocation8 + $0xa4] sm:$0xf]
        %v1011 = vld [vmem:[#allocation8 + $0xa8] sm:$0xff]
        %v1012 = vld [vmem:[#allocation8 + $0xb0] sm:$0xf]
        %v1013 = vld [vmem:[#allocation8 + $0xb4] sm:$0xff]
        %v1014 = vld [vmem:[#allocation8 + $0xbc] sm:$0xf]
        %v1015 = vld [vmem:[%s6] sm:$0x7]
        %v1017 = vlaneseq
        %v1018 = vshrl.u32 %v1017, 7
        %v1019 = vsub.s32 0, %v1018
        %v1020 = vrot.slane %v1015, %v1019
        %v1021 = vlaneseq
        %v1022 = vshrl.u32 %v1021, 7
        %v1023 = vsub.s32 1, %v1022
        %v1024 = vrot.slane %v1015, %v1023
        %v1025 = vlaneseq
        %v1026 = vshrl.u32 %v1025, 7
        %v1027 = vsub.s32 2, %v1026
        %v1028 = vrot.slane %v1015, %v1027
        %v1064 = vunpack.c.l.b16 %v983
        %v1065 = vunpack.c.h.b16 %v983
        %v1066 = vunpack.c.l.b16 %v984
        %v1067 = vunpack.c.l.b16 %v985
        %v1068 = vunpack.c.h.b16 %v985
        %v1069 = vunpack.c.l.b16 %v986
        %v1070 = vunpack.c.l.b16 %v987
        %v1071 = vunpack.c.h.b16 %v987
        %v1072 = vunpack.c.l.b16 %v988
        %v1073 = vunpack.c.l.b16 %v989
        %v1074 = vunpack.c.h.b16 %v989
        %v1075 = vunpack.c.l.b16 %v990
        %v1076 = vunpack.c.l.b16 %v991
        %v1077 = vunpack.c.h.b16 %v991
        %v1078 = vunpack.c.l.b16 %v992
        %v1079 = vunpack.c.l.b16 %v993
        %v1080 = vunpack.c.h.b16 %v993
        %v1081 = vunpack.c.l.b16 %v994
        %v1082 = vunpack.c.l.b16 %v995
        %v1083 = vunpack.c.h.b16 %v995
        %v1084 = vunpack.c.l.b16 %v996
        %v1085 = vunpack.c.l.b16 %v997
        %v1086 = vunpack.c.h.b16 %v997
        %v1087 = vunpack.c.l.b16 %v998
        %v1088 = vunpack.c.l.b16 %v999
        %v1089 = vunpack.c.h.b16 %v999
        %v1090 = vunpack.c.l.b16 %v1000
        %v1091 = vunpack.c.l.b16 %v1001
        %v1092 = vunpack.c.h.b16 %v1001
        %v1093 = vunpack.c.l.b16 %v1002
        %v1094 = vunpack.c.l.b16 %v1003
        %v1095 = vunpack.c.h.b16 %v1003
        %v1096 = vunpack.c.l.b16 %v1004
        %v1097 = vunpack.c.l.b16 %v1005
        %v1098 = vunpack.c.h.b16 %v1005
        %v1099 = vunpack.c.l.b16 %v1006
        %v1100 = vunpack.c.l.b16 %v1007
        %v1101 = vunpack.c.h.b16 %v1007
        %v1102 = vunpack.c.l.b16 %v1008
        %v1103 = vunpack.c.l.b16 %v1009
        %v1104 = vunpack.c.h.b16 %v1009
        %v1105 = vunpack.c.l.b16 %v1010
        %v1106 = vunpack.c.l.b16 %v1011
        %v1107 = vunpack.c.h.b16 %v1011
        %v1108 = vunpack.c.l.b16 %v1012
        %v1109 = vunpack.c.l.b16 %v1013
        %v1110 = vunpack.c.h.b16 %v1013
        %v1111 = vunpack.c.l.b16 %v1014
        %v1112 = vpack.c.b16 %v1067, %v1064
        %v1113 = vpack.c.b16 %v1068, %v1065
        %v1114 = vpack.c.b16 %v1069, %v1066
        %v1115 = vpack.c.b16 %v1073, %v1070
        %v1116 = vpack.c.b16 %v1074, %v1071
        %v1117 = vpack.c.b16 %v1075, %v1072
        %v1118 = vpack.c.b16 %v1079, %v1076
        %v1119 = vpack.c.b16 %v1080, %v1077
        %v1120 = vpack.c.b16 %v1081, %v1078
        %v1121 = vpack.c.b16 %v1085, %v1082
        %v1122 = vpack.c.b16 %v1086, %v1083
        %v1123 = vpack.c.b16 %v1087, %v1084
        %v1124 = vpack.c.b16 %v1091, %v1088
        %v1125 = vpack.c.b16 %v1092, %v1089
        %v1126 = vpack.c.b16 %v1093, %v1090
        %v1127 = vpack.c.b16 %v1097, %v1094
        %v1128 = vpack.c.b16 %v1098, %v1095
        %v1129 = vpack.c.b16 %v1099, %v1096
        %v1130 = vpack.c.b16 %v1103, %v1100
        %v1131 = vpack.c.b16 %v1104, %v1101
        %v1132 = vpack.c.b16 %v1105, %v1102
        %v1133 = vpack.c.b16 %v1109, %v1106
        %v1134 = vpack.c.b16 %v1110, %v1107
        %v1135 = vpack.c.b16 %v1111, %v1108
        %1160 = vmatprep.subr.bf16.mxu0 %v1113
        %1161 = vmatpush1.bf16.msra.mxu0 %v1112
        %1162 = vmatprep.subr.bf16.mxu0 %v1116
        %1163 = vmatpush1.bf16.msra.mxu0 %v1115
        %1164 = vmatprep.subr.bf16.mxu0 %v1119
        %1165 = vmatpush1.bf16.msra.mxu0 %v1118
        %1166 = vmatprep.subr.bf16.mxu0 %v1122
        %1167 = vmatpush1.bf16.msra.mxu0 %v1121
        %1168 = vmatprep.subr.bf16.mxu0 %v1125
        %1169 = vmatpush1.bf16.msra.mxu0 %v1124
        %1170 = vmatprep.subr.bf16.mxu0 %v1128
        %1171 = vmatpush1.bf16.msra.mxu0 %v1127
        %1172 = vmatprep.subr.bf16.mxu0 %v1131
        %1173 = vmatpush1.bf16.msra.mxu0 %v1130
        %1174 = vmatprep.subr.bf16.mxu0 %v1134
        %1175 = vmatpush1.bf16.msra.mxu0 %v1133
        %1176 = vmatprep.subr.bf16.mxu0 0
        %1177 = vmatpush1.bf16.msra.mxu0 0
        %1178 = vmatprep.subr.bf16.mxu0 0
        %1179 = vmatpush1.bf16.msra.mxu0 0
        %1180 = vmatprep.subr.bf16.mxu0 0
        %1181 = vmatpush1.bf16.msra.mxu0 0
        %1182 = vmatprep.subr.bf16.mxu0 0
        %1183 = vmatpush1.bf16.msra.mxu0 0
        %1184 = vmatprep.subr.bf16.mxu0 0
        %1185 = vmatpush1.bf16.msra.mxu0 0
        %1186 = vmatprep.subr.bf16.mxu0 0
        %1187 = vmatpush1.bf16.msra.mxu0 0
        %1188 = vmatprep.subr.bf16.mxu0 0
        %1189 = vmatpush1.bf16.msra.mxu0 0
        %1190 = vmatprep.subr.bf16.mxu0 0
        %1191 = vmatpush1.bf16.msra.mxu0 0
        %1192 = vmatprep.mubr.bf16.mxu0 0
        %1193 = vmatmul.mubr.bf16.gmra.mrb[0].mxu0 %v982
        %v1194 = vpop.f32.mrb[0].mxu0
        %v1195 = vadd.f32 %v1020, %v1194
        %v1196 = vpop.f32.mrb[0].mxu0
        %v1197 = vadd.f32 %v1024, %v1196
        %v1198 = vpop.f32.mrb[0].mxu0
        %v1199 = vpop.f32.mrb[0].mxu0
        %1200 = vdwg.mxu0
        %1201 = vmatprep.subr.bf16.mxu0 0
        %1202 = vmatpush1.bf16.msra.mxu0 %v1114
        %1203 = vmatprep.subr.bf16.mxu0 0
        %1204 = vmatpush1.bf16.msra.mxu0 %v1117
        %1205 = vmatprep.subr.bf16.mxu0 0
        %1206 = vmatpush1.bf16.msra.mxu0 %v1120
        %1207 = vmatprep.subr.bf16.mxu0 0
        %1208 = vmatpush1.bf16.msra.mxu0 %v1123
        %1209 = vmatprep.subr.bf16.mxu0 0
        %1210 = vmatpush1.bf16.msra.mxu0 %v1126
        %1211 = vmatprep.subr.bf16.mxu0 0
        %1212 = vmatpush1.bf16.msra.mxu0 %v1129
        %1213 = vmatprep.subr.bf16.mxu0 0
        %1214 = vmatpush1.bf16.msra.mxu0 %v1132
        %1215 = vmatprep.subr.bf16.mxu0 0
        %1216 = vmatpush1.bf16.msra.mxu0 %v1135
        %1217 = vmatprep.subr.bf16.mxu0 0
        %1218 = vmatpush1.bf16.msra.mxu0 0
        %1219 = vmatprep.subr.bf16.mxu0 0
        %1220 = vmatpush1.bf16.msra.mxu0 0
        %1221 = vmatprep.subr.bf16.mxu0 0
        %1222 = vmatpush1.bf16.msra.mxu0 0
        %1223 = vmatprep.subr.bf16.mxu0 0
        %1224 = vmatpush1.bf16.msra.mxu0 0
        %1225 = vmatprep.subr.bf16.mxu0 0
        %1226 = vmatpush1.bf16.msra.mxu0 0
        %1227 = vmatprep.subr.bf16.mxu0 0
        %1228 = vmatpush1.bf16.msra.mxu0 0
        %1229 = vmatprep.subr.bf16.mxu0 0
        %1230 = vmatpush1.bf16.msra.mxu0 0
        %1231 = vmatprep.subr.bf16.mxu0 0
        %1232 = vmatpush1.bf16.msra.mxu0 0
        %1233 = vmatprep.mubr.bf16.mxu0 0
        %1234 = vmatmul.mubr.bf16.gmra.mrb[0].mxu0 %v982
        %v1235 = vpop.f32.mrb[0].mxu0
        %v1236 = vadd.f32 %v1028, %v1235
        %v1237 = vpop.f32.mrb[0].mxu0
        %v1238 = vpop.f32.mrb[0].mxu0
        %v1239 = vpop.f32.mrb[0].mxu0
        %1240 = vdwg.mxu0
        %v1241 = vmax.f32 %v1195, 0.0
        %v1242 = vmax.f32 %v1197, 0.0
        %v1243 = vmax.f32 %v1236, 0.0
        %v1244 = vpack.c.bf16 %v1241, %v1241
        %v1245 = vpack.c.bf16 %v1242, %v1242
        %v1246 = vpack.c.bf16 %v1243, %v1243
        %v1247 = vld [vmem:[#allocation10] sm:$0xf]
        %v1248 = vld [vmem:[#allocation10 + $0x4] sm:$0xf]
        %v1249 = vld [vmem:[#allocation10 + $0x8] sm:$0xf]
        %v1250 = vld [vmem:[#allocation10 + $0xc] sm:$0xf]
        %v1251 = vld [vmem:[#allocation10 + $0x10] sm:$0xf]
        %v1252 = vld [vmem:[#allocation10 + $0x14] sm:$0xf]
        %v1253 = vld [vmem:[#allocation10 + $0x18] sm:$0xf]
        %v1254 = vld [vmem:[#allocation10 + $0x1c] sm:$0xf]
        %v1255 = vld [vmem:[#allocation10 + $0x20] sm:$0xf]
        %v1256 = vld [vmem:[#allocation10 + $0x24] sm:$0xf]
        %v1257 = vld [vmem:[#allocation10 + $0x28] sm:$0xf]
        %v1258 = vld [vmem:[#allocation10 + $0x2c] sm:$0xf]
        %v1259 = vld [vmem:[#allocation10 + $0x30] sm:$0xf]
        %v1260 = vld [vmem:[#allocation10 + $0x34] sm:$0xf]
        %v1261 = vld [vmem:[#allocation10 + $0x38] sm:$0xf]
        %v1262 = vld [vmem:[#allocation10 + $0x3c] sm:$0xf]
        %v1263 = vld [vmem:[#allocation10 + $0x40] sm:$0xf]
        %v1264 = vld [vmem:[#allocation10 + $0x44] sm:$0xf]
        %v1265 = vld [vmem:[#allocation10 + $0x48] sm:$0xf]
        %v1266 = vld [vmem:[#allocation10 + $0x4c] sm:$0xf]
        %v1267 = vld [vmem:[#allocation10 + $0x50] sm:$0xf]
        %v1268 = vld [vmem:[#allocation10 + $0x54] sm:$0xf]
        %v1269 = vld [vmem:[#allocation10 + $0x58] sm:$0xf]
        %v1270 = vld [vmem:[#allocation10 + $0x5c] sm:$0xf]
        %v1271 = vld [vmem:[#allocation10 + $0x60] sm:$0xf]
        %v1272 = vld [vmem:[#allocation10 + $0x64] sm:$0xf]
        %v1273 = vld [vmem:[#allocation10 + $0x68] sm:$0xf]
        %v1274 = vld [vmem:[#allocation10 + $0x6c] sm:$0xf]
        %v1275 = vld [vmem:[#allocation10 + $0x70] sm:$0xf]
        %v1276 = vld [vmem:[#allocation10 + $0x74] sm:$0xf]
        %v1277 = vld [vmem:[#allocation10 + $0x78] sm:$0xf]
        %v1278 = vld [vmem:[#allocation10 + $0x7c] sm:$0xf]
        %v1279 = vld [vmem:[#allocation10 + $0x80] sm:$0xf]
        %v1280 = vld [vmem:[#allocation10 + $0x84] sm:$0xf]
        %v1281 = vld [vmem:[#allocation10 + $0x88] sm:$0xf]
        %v1282 = vld [vmem:[#allocation10 + $0x8c] sm:$0xf]
        %v1283 = vld [vmem:[#allocation10 + $0x90] sm:$0xf]
        %v1284 = vld [vmem:[#allocation10 + $0x94] sm:$0xf]
        %v1285 = vld [vmem:[#allocation10 + $0x98] sm:$0xf]
        %v1286 = vld [vmem:[#allocation10 + $0x9c] sm:$0xf]
        %v1287 = vld [vmem:[#allocation10 + $0xa0] sm:$0xf]
        %v1288 = vld [vmem:[#allocation10 + $0xa4] sm:$0xf]
        %v1289 = vld [vmem:[#allocation10 + $0xa8] sm:$0xf]
        %v1290 = vld [vmem:[#allocation10 + $0xac] sm:$0xf]
        %v1291 = vld [vmem:[#allocation10 + $0xb0] sm:$0xf]
        %v1292 = vld [vmem:[#allocation10 + $0xb4] sm:$0xf]
        %v1293 = vld [vmem:[#allocation10 + $0xb8] sm:$0xf]
        %v1294 = vld [vmem:[#allocation10 + $0xbc] sm:$0xf]
        %v1295 = vlaneseq
        %v1296 = vshrl.u32 %v1295, 7
        %v1297 = vsub.s32 5, %v1296
        %v1298 = vrot.slane %v396, %v1297
        %v1347 = vunpack.c.l.b16 %v1247
        %v1348 = vunpack.c.l.b16 %v1248
        %v1349 = vunpack.c.l.b16 %v1249
        %v1350 = vunpack.c.l.b16 %v1250
        %v1351 = vunpack.c.l.b16 %v1251
        %v1352 = vunpack.c.l.b16 %v1252
        %v1353 = vunpack.c.l.b16 %v1253
        %v1354 = vunpack.c.l.b16 %v1254
        %v1355 = vunpack.c.l.b16 %v1255
        %v1356 = vunpack.c.l.b16 %v1256
        %v1357 = vunpack.c.l.b16 %v1257
        %v1358 = vunpack.c.l.b16 %v1258
        %v1359 = vunpack.c.l.b16 %v1259
        %v1360 = vunpack.c.l.b16 %v1260
        %v1361 = vunpack.c.l.b16 %v1261
        %v1362 = vunpack.c.l.b16 %v1262
        %v1363 = vunpack.c.l.b16 %v1263
        %v1364 = vunpack.c.l.b16 %v1264
        %v1365 = vunpack.c.l.b16 %v1265
        %v1366 = vunpack.c.l.b16 %v1266
        %v1367 = vunpack.c.l.b16 %v1267
        %v1368 = vunpack.c.l.b16 %v1268
        %v1369 = vunpack.c.l.b16 %v1269
        %v1370 = vunpack.c.l.b16 %v1270
        %v1371 = vunpack.c.l.b16 %v1271
        %v1372 = vunpack.c.l.b16 %v1272
        %v1373 = vunpack.c.l.b16 %v1273
        %v1374 = vunpack.c.l.b16 %v1274
        %v1375 = vunpack.c.l.b16 %v1275
        %v1376 = vunpack.c.l.b16 %v1276
        %v1377 = vunpack.c.l.b16 %v1277
        %v1378 = vunpack.c.l.b16 %v1278
        %v1379 = vunpack.c.l.b16 %v1279
        %v1380 = vunpack.c.l.b16 %v1280
        %v1381 = vunpack.c.l.b16 %v1281
        %v1382 = vunpack.c.l.b16 %v1282
        %v1383 = vunpack.c.l.b16 %v1283
        %v1384 = vunpack.c.l.b16 %v1284
        %v1385 = vunpack.c.l.b16 %v1285
        %v1386 = vunpack.c.l.b16 %v1286
        %v1387 = vunpack.c.l.b16 %v1287
        %v1388 = vunpack.c.l.b16 %v1288
        %v1389 = vunpack.c.l.b16 %v1289
        %v1390 = vunpack.c.l.b16 %v1290
        %v1391 = vunpack.c.l.b16 %v1291
        %v1392 = vunpack.c.l.b16 %v1292
        %v1393 = vunpack.c.l.b16 %v1293
        %v1394 = vunpack.c.l.b16 %v1294
        %v1395 = vpack.c.b16 %v1348, %v1347
        %v1396 = vpack.c.b16 %v1350, %v1349
        %v1397 = vpack.c.b16 %v1352, %v1351
        %v1398 = vpack.c.b16 %v1354, %v1353
        %v1399 = vpack.c.b16 %v1356, %v1355
        %v1400 = vpack.c.b16 %v1358, %v1357
        %v1401 = vpack.c.b16 %v1360, %v1359
        %v1402 = vpack.c.b16 %v1362, %v1361
        %v1403 = vpack.c.b16 %v1364, %v1363
        %v1404 = vpack.c.b16 %v1366, %v1365
        %v1405 = vpack.c.b16 %v1368, %v1367
        %v1406 = vpack.c.b16 %v1370, %v1369
        %v1407 = vpack.c.b16 %v1372, %v1371
        %v1408 = vpack.c.b16 %v1374, %v1373
        %v1409 = vpack.c.b16 %v1376, %v1375
        %v1410 = vpack.c.b16 %v1378, %v1377
        %v1411 = vpack.c.b16 %v1380, %v1379
        %v1412 = vpack.c.b16 %v1382, %v1381
        %v1413 = vpack.c.b16 %v1384, %v1383
        %v1414 = vpack.c.b16 %v1386, %v1385
        %v1415 = vpack.c.b16 %v1388, %v1387
        %v1416 = vpack.c.b16 %v1390, %v1389
        %v1417 = vpack.c.b16 %v1392, %v1391
        %v1418 = vpack.c.b16 %v1394, %v1393
        %1443 = vmatprep.subr.bf16.mxu0 0
        %1444 = vmatpush1.bf16.msra.mxu0 %v1395
        %1445 = vmatprep.subr.bf16.mxu0 0
        %1446 = vmatpush1.bf16.msra.mxu0 %v1396
        %1447 = vmatprep.subr.bf16.mxu0 0
        %1448 = vmatpush1.bf16.msra.mxu0 %v1397
        %1449 = vmatprep.subr.bf16.mxu0 0
        %1450 = vmatpush1.bf16.msra.mxu0 %v1398
        %1451 = vmatprep.subr.bf16.mxu0 0
        %1452 = vmatpush1.bf16.msra.mxu0 %v1399
        %1453 = vmatprep.subr.bf16.mxu0 0
        %1454 = vmatpush1.bf16.msra.mxu0 %v1400
        %1455 = vmatprep.subr.bf16.mxu0 0
        %1456 = vmatpush1.bf16.msra.mxu0 %v1401
        %1457 = vmatprep.subr.bf16.mxu0 0
        %1458 = vmatpush1.bf16.msra.mxu0 %v1402
        %1459 = vmatprep.subr.bf16.mxu0 0
        %1460 = vmatpush1.bf16.msra.mxu0 %v1403
        %1461 = vmatprep.subr.bf16.mxu0 0
        %1462 = vmatpush1.bf16.msra.mxu0 %v1404
        %1463 = vmatprep.subr.bf16.mxu0 0
        %1464 = vmatpush1.bf16.msra.mxu0 %v1405
        %1465 = vmatprep.subr.bf16.mxu0 0
        %1466 = vmatpush1.bf16.msra.mxu0 %v1406
        %1467 = vmatprep.subr.bf16.mxu0 0
        %1468 = vmatpush1.bf16.msra.mxu0 %v1407
        %1469 = vmatprep.subr.bf16.mxu0 0
        %1470 = vmatpush1.bf16.msra.mxu0 %v1408
        %1471 = vmatprep.subr.bf16.mxu0 0
        %1472 = vmatpush1.bf16.msra.mxu0 %v1409
        %1473 = vmatprep.subr.bf16.mxu0 0
        %1474 = vmatpush1.bf16.msra.mxu0 %v1410
        %1475 = vmatprep.mubr.bf16.mxu0 %v1245
        %1476 = vmatmul.mubr.bf16.gmra.mrb[0].mxu0 %v1244
        %v1477 = vpop.f32.mrb[0].mxu0
        %v1478 = vadd.f32 %v1298, %v1477
        %v1479 = vpop.f32.mrb[0].mxu0
        %v1480 = vpop.f32.mrb[0].mxu0
        %v1481 = vpop.f32.mrb[0].mxu0
        %1482 = vdwg.mxu0
        %1483 = vmatprep.subr.bf16.mxu0 0
        %1484 = vmatpush1.bf16.msra.mxu0 %v1411
        %1485 = vmatprep.subr.bf16.mxu0 0
        %1486 = vmatpush1.bf16.msra.mxu0 %v1412
        %1487 = vmatprep.subr.bf16.mxu0 0
        %1488 = vmatpush1.bf16.msra.mxu0 %v1413
        %1489 = vmatprep.subr.bf16.mxu0 0
        %1490 = vmatpush1.bf16.msra.mxu0 %v1414
        %1491 = vmatprep.subr.bf16.mxu0 0
        %1492 = vmatpush1.bf16.msra.mxu0 %v1415
        %1493 = vmatprep.subr.bf16.mxu0 0
        %1494 = vmatpush1.bf16.msra.mxu0 %v1416
        %1495 = vmatprep.subr.bf16.mxu0 0
        %1496 = vmatpush1.bf16.msra.mxu0 %v1417
        %1497 = vmatprep.subr.bf16.mxu0 0
        %1498 = vmatpush1.bf16.msra.mxu0 %v1418
        %1499 = vmatprep.subr.bf16.mxu0 0
        %1500 = vmatpush1.bf16.msra.mxu0 0
        %1501 = vmatprep.subr.bf16.mxu0 0
        %1502 = vmatpush1.bf16.msra.mxu0 0
        %1503 = vmatprep.subr.bf16.mxu0 0
        %1504 = vmatpush1.bf16.msra.mxu0 0
        %1505 = vmatprep.subr.bf16.mxu0 0
        %1506 = vmatpush1.bf16.msra.mxu0 0
        %1507 = vmatprep.subr.bf16.mxu0 0
        %1508 = vmatpush1.bf16.msra.mxu0 0
        %1509 = vmatprep.subr.bf16.mxu0 0
        %1510 = vmatpush1.bf16.msra.mxu0 0
        %1511 = vmatprep.subr.bf16.mxu0 0
        %1512 = vmatpush1.bf16.msra.mxu0 0
        %1513 = vmatprep.subr.bf16.mxu0 0
        %1514 = vmatpush1.bf16.msra.mxu0 0
        %1515 = vmatprep.mubr.bf16.mxu0 0
        %1516 = vmatmul.mubr.bf16.gmra.mrb[0].mxu0 %v1246
        %v1517 = vpop.f32.mrb[0].mxu0
        %v1518 = vadd.f32 %v1478, %v1517
        %v1519 = vpop.f32.mrb[0].mxu0
        %v1520 = vpop.f32.mrb[0].mxu0
        %v1521 = vpop.f32.mrb[0].mxu0
        %1522 = vdwg.mxu0
        %v1523 = vadd.f32 %v959, %v1518
        %1524 = vst [vmem:[%s393] sm:$0xff] %v1523
        %s1525 = sand.u32 %s209, 1
        %s1526 = scalar_lea.sflag [#allocation4], %s1525
        %s1527 = sand.u32 %s209, 1
        %s1528 = smul.addr %s1527, 8
        %s1529 = scalar_lea.vmem [#allocation13], %s1528
        // Predicated region
        $region77: #{tpu_custom_call.1} parent=51 // pred_check
          %p1530 = pneg %p219
        $region78: #{tpu_custom_call.1} parent=51 // pred_check_branch
          %1532 = sbr.rel (%p1530) target = $region80
        $region79: #{tpu_custom_call.1} parent=51 // pred_region
          %s1534 = ssub.s32 128, 128
          %1535 = vsyncadd %s1526, %s1534
          %s1536 = smul.addr %s28, 128
          %s1537 = scalar_lea.hbm %s8, %s1536
          %s1539 = sshll.u32 %s1529, 4
          %s1540 = int_to_ptr.vmem [resolvable:$true] %s1539
          %1542 = dma.vmem_to_hbm [thread:$0]  %s1540, 128, %s1537, %s1526
        $region80: #{tpu_custom_call.1} parent=51 // pred_fallthru
          _
      $region52: #{tpu_custom_call.1} parent=5 // pred_fallthru
        _
      %p1543 = scmp.le.s32.totalorder 2, %s23
      // Predicated region
      $region81: #{tpu_custom_call.1} parent=5 // pred_check
        %p1544 = pneg %p1543
      $region82: #{tpu_custom_call.1} parent=5 // pred_check_branch
        %1546 = sbr.rel (%p1544) target = $region84
      $region83: #{tpu_custom_call.1} parent=5 // pred_region
        %s1547 = ssub.s32 %s23, 2
        // Predicated region
        $region85: #{tpu_custom_call.1} parent=83 // pred_check
          %p1548 = pneg %p225
        $region86: #{tpu_custom_call.1} parent=83 // pred_check_branch
          %1550 = sbr.rel (%p1548) target = $region88
        $region87: #{tpu_custom_call.1} parent=83 // pred_region
          %s1551 = sand.u32 %s210, 1
          %s1552 = scalar_lea.sflag [#allocation4], %s1551
          %s1553 = sand.u32 %s210, 1
          %s1554 = smul.addr %s1553, 8
          %s1555 = scalar_lea.vmem [#allocation13], %s1554
          %1556 = dma.done %s1552, 128
        $region88: #{tpu_custom_call.1} parent=83 // pred_fallthru
          _
      $region84: #{tpu_custom_call.1} parent=5 // pred_fallthru
        _
    $region6: #{tpu_custom_call.1} parent=1 // loop_footer
      %s27 = sadd.s32 1, %s23
    $region7: #{tpu_custom_call.1} parent=1 // loop_footer_branch
      %22 = sbr.rel target = $region3
    $region8: #{tpu_custom_call.1} parent=1 // loop_exit
      _
    %1557 = vsyncpa [#allocation3], 1
    %s1558 = scalar_lea.sflag [#allocation3], 1
    %1559 = vsyncpa %s1558, 1
    %1560 = vsyncpa [#allocation6], 1
    %1561 = vsyncpa [#allocation9], 1
    %1562 = vsyncpa [#allocation12], 1
    %1563 = vsyncpa [#allocation4], 1
    %s1564 = scalar_lea.sflag [#allocation4], 1
    %1565 = vsyncpa %s1564, 1

</llo_original>
